<compile_context>
chip_gen: v5e
topology: v5e:2x2
jax: 0.10.0
libtpu: 0.0.40
codegen_flags: <defaults>
</compile_context>

<pallas_src>
import jax
import jax.numpy as jnp
from jax.experimental import pallas as pl
from jax.experimental.pallas import tpu as pltpu

BF16 = jnp.bfloat16
F32 = jnp.float32


def _mxu(x_f32, w_bf16):
    # bf16 operands, f32 accumulation -> single MXU pass, no f32 emulation.
    return jnp.dot(x_f32.astype(BF16), w_bf16, preferred_element_type=F32)


# ---------------------------------------------------------------------------
# Fused kernel: one grid step == one AdaAttCore forward (LSTM + attention)
# ---------------------------------------------------------------------------
def adaatt_core_kernel(xt_ref, fc_ref, h0_ref, c0_ref, att_ref, patt_ref,
                       wl_ref, w1_ref, w2_ref, a2h_ref, bias_ref,
                       out_ref, h_ref, c_ref):
    R = h0_ref.shape[-1]
    t = pl.program_id(0)

    # Recurrent state lives in the resident (constant-index) output blocks.
    @pl.when(t == 0)
    def _():
        h_ref[...] = h0_ref[...]
        c_ref[...] = c0_ref[...]

    xt = xt_ref[0]                     # (B, D)
    fc = fc_ref[...]                   # (B, D)
    h_prev = h_ref[...]                # (B, R)
    c_prev = c_ref[...]                # (B, R)

    # ---- all small vectors come from one coalesced ref (one DMA descriptor) ----
    b_lstm = bias_ref[:, 0:5 * R]
    b_fr1 = bias_ref[:, 5 * R:6 * R]
    b_ho1 = bias_ref[:, 6 * R:7 * R]
    b_fr2 = bias_ref[:, 7 * R:8 * R]
    b_ho2 = bias_ref[:, 8 * R:9 * R]
    alpha_w = bias_ref[:, 9 * R:10 * R]
    a2h_b = bias_ref[:, 10 * R:11 * R]

    # ---------------- LSTM: three K=D matmuls, no (B,3D) concat copy ----------------
    big = (_mxu(xt, wl_ref[0]) + _mxu(fc, wl_ref[1]) + _mxu(h_prev, wl_ref[2])
           + b_lstm)                                              # (B, 5R) f32

    in_gate = jax.nn.sigmoid(big[:, 0:R])
    forget_gate = jax.nn.sigmoid(big[:, R:2 * R])
    out_gate = jax.nn.sigmoid(big[:, 2 * R:3 * R])
    in_transform = jnp.tanh(big[:, 3 * R:4 * R])
    n5 = big[:, 4 * R:5 * R]

    next_c = forget_gate * c_prev + in_gate * in_transform
    tanh_c = jnp.tanh(next_c)
    next_h = out_gate * tanh_c                                    # dropout == identity
    fake_in = jax.nn.sigmoid(n5) * tanh_c

    h_ref[...] = next_h
    c_ref[...] = next_c

    # ---------------- attention (stacked weights, no zero blocks) ----------------
    fake = jnp.maximum(_mxu(fake_in, w1_ref[0]) + b_fr1, 0.0)     # fr_linear + ReLU
    h_lin = jnp.tanh(_mxu(next_h, w1_ref[1]) + b_ho1)             # ho_linear + Tanh
    fake_emb = _mxu(fake, w2_ref[0]) + b_fr2                      # fr_embed
    h_emb = _mxu(h_lin, w2_ref[1]) + b_ho2                        # ho_embed

    # scores over [fake_region ; conv_feat]; alpha bias cancels in the softmax
    hA_fake = jnp.tanh(fake_emb + h_emb)                          # (B, H)
    s_fake = jnp.sum(hA_fake * alpha_w, axis=-1, keepdims=True)   # (B, 1)

    pconv = patt_ref[...].astype(F32)                             # (B, A, H)
    hA_conv = jnp.tanh(pconv + h_emb[:, None, :])                 # (B, A, H)
    s_conv = jnp.sum(hA_conv * alpha_w[None, :, :], axis=-1)      # (B, A)

    # softmax over the (A + 1) positions
    m = jnp.maximum(s_fake, jnp.max(s_conv, axis=-1, keepdims=True))
    e_fake = jnp.exp(s_fake - m)                                  # (B, 1)
    e_conv = jnp.exp(s_conv - m)                                  # (B, A)
    inv = pl.reciprocal(e_fake + jnp.sum(e_conv, axis=-1, keepdims=True), approx=True)
    pi_fake = e_fake * inv
    pi_conv = e_conv * inv

    # bmm(PI, img_all) == weighted sum of [fake ; conv] rows
    conv = att_ref[...].astype(F32)                               # (B, A, R)
    vis = pi_fake * fake + jnp.sum(pi_conv[:, :, None] * conv, axis=1)   # (B, R)

    atten_out = vis + h_lin
    out_ref[0] = jnp.tanh(_mxu(atten_out, a2h_ref[...]) + a2h_b)


# ---------------------------------------------------------------------------
# Wrappers
# ---------------------------------------------------------------------------
def _pad_batch(x, axis, bp):
    b = x.shape[axis]
    if b == bp:
        return x
    pad = [(0, 0)] * x.ndim
    pad[axis] = (0, bp - b)
    return jnp.pad(x, pad)


def adaatt_core_seq(xt_seq, fc_feats, att_feats, p_att_feats, state, packed):
    """Run the core for T steps (grid over timesteps, weights stay VMEM-resident)."""
    T, B, D = xt_seq.shape
    h0 = state[0][0]
    c0 = state[1][0]
    R = h0.shape[-1]
    A = att_feats.shape[1]
    assert (D == R and att_feats.shape[-1] == R and p_att_feats.shape[-1] == R), \
        "AdaAttCore requires input_encoding_size == rnn_size == att_hid_size"

    # Pad batch up to a multiple of 8 sublanes (padded rows compute garbage
    # but stay finite; they are sliced off below).
    Bp = ((B + 7) // 8) * 8
    xt_p = _pad_batch(xt_seq, 1, Bp)
    fc_p = _pad_batch(fc_feats, 0, Bp)
    h0_p = _pad_batch(h0, 0, Bp)
    c0_p = _pad_batch(c0, 0, Bp)
    att_p = _pad_batch(att_feats, 0, Bp).astype(BF16)    # half the feature DMA bytes
    patt_p = _pad_batch(p_att_feats, 0, Bp).astype(BF16)

    const2 = lambda t: (0, 0)
    const3 = lambda t: (0, 0, 0)

    in_specs = [
        pl.BlockSpec((1, Bp, D), lambda t: (t, 0, 0)),    # xt: per-step
        pl.BlockSpec((Bp, D), const2),                    # fc: resident
        pl.BlockSpec((Bp, R), const2),                    # h0
        pl.BlockSpec((Bp, R), const2),                    # c0
        pl.BlockSpec((Bp, A, R), const3),                 # att feats (bf16)
        pl.BlockSpec((Bp, A, R), const3),                 # p_att feats (bf16)
        pl.BlockSpec((3, D, 5 * R), const3),              # W_lstm (bf16), resident
        pl.BlockSpec((2, R, R), const3),                  # [fr_lin | ho_lin]
        pl.BlockSpec((2, R, R), const3),                  # [fr_emb | ho_emb]
        pl.BlockSpec((R, R), const2),                     # att2h weight
        pl.BlockSpec((1, 11 * R), const2),                # coalesced biases + alpha_w
    ]
    out_specs = (
        pl.BlockSpec((1, Bp, R), lambda t: (t, 0, 0)),    # atten_out per step
        pl.BlockSpec((Bp, R), const2),                    # final h (carried)
        pl.BlockSpec((Bp, R), const2),                    # final c (carried)
    )
    out_shape = (jax.ShapeDtypeStruct((T, Bp, R), F32),
                 jax.ShapeDtypeStruct((Bp, R), F32),
                 jax.ShapeDtypeStruct((Bp, R), F32))

    w_bytes = (3 * D * 5 * R + 4 * R * R + R * R) * 2 + 11 * R * 4
    flops = 2 * T * Bp * (3 * D * 5 * R + 4 * R * R + R * R + (A + 1) * R)
    transc = T * Bp * ((A + 8) * R + (A + 1))
    bytes_acc = (w_bytes + T * Bp * D * 4 + Bp * D * 4 + 4 * Bp * R * 4
                 + 2 * Bp * A * R * 2 + T * Bp * R * 4)

    out_seq, h_out, c_out = pl.pallas_call(
        adaatt_core_kernel,
        grid=(T,),
        in_specs=in_specs,
        out_specs=out_specs,
        out_shape=out_shape,
        compiler_params=pltpu.CompilerParams(
            dimension_semantics=("arbitrary",)),
        cost_estimate=pl.CostEstimate(flops=int(flops),
                                      transcendentals=int(transc),
                                      bytes_accessed=int(bytes_acc)),
    )(xt_p, fc_p, h0_p, c0_p, att_p, patt_p,
      packed['W_lstm'], packed['W1'], packed['W2'], packed['a2h_w'],
      packed['bias_pack'])

    return out_seq[:, :B], (h_out[:B][None], c_out[:B][None])


def adaatt_core(xt, fc_feats, att_feats, p_att_feats, state, packed):
    """Single-step call, matching the torch AdaAttCore.forward signature."""
    out_seq, new_state = adaatt_core_seq(xt[None], fc_feats, att_feats,
                                         p_att_feats, state, packed)
    return out_seq[0], new_state


# ---------------------------------------------------------------------------
# Deterministic parameter init (synthetic; matches nn.Linear shapes)
# ---------------------------------------------------------------------------
def init_params(key, E, R, H, scale=0.05):
    def lin(k, fin, fout):
        kw, kb = jax.random.split(k)
        return (jax.random.normal(kw, (fin, fout), F32) * scale,
                jax.random.normal(kb, (1, fout), F32) * scale)

    keys = jax.random.split(key, 12)
    return {
        'w2h':    lin(keys[0], E, 4 * R),
        'v2h':    lin(keys[1], R, 4 * R),
        'h2h':    lin(keys[2], R, 4 * R),
        'r_w2h':  lin(keys[3], E, R),
        'r_v2h':  lin(keys[4], R, R),
        'r_h2h':  lin(keys[5], R, R),
        'fr_lin': lin(keys[6], R, E),
        'fr_emb': lin(keys[7], E, H),
        'ho_lin': lin(keys[8], R, E),
        'ho_emb': lin(keys[9], E, H),
        # alpha_net: Linear(H, 1) -> stored lane-major as (1, H) weight + (1, 1) bias
        'alpha':  (jax.random.normal(keys[10], (1, H), F32) * scale,
                   jnp.zeros((1, 1), F32)),
        'att2h':  lin(keys[11], R, R),
    }


def pack_params(p, w_dtype=BF16):
    """Pack the per-layer f32 params into a few DMA-friendly arrays (done once)."""
    w2h_w, w2h_b = p['w2h']
    v2h_w, v2h_b = p['v2h']
    h2h_w, h2h_b = p['h2h']
    rw_w, rw_b = p['r_w2h']
    rv_w, rv_b = p['r_v2h']
    rh_w, rh_b = p['r_h2h']

    # LSTM: stacked along K-source [xt | fc | h0]; cols = [4R gates | R r-path]
    W_lstm = jnp.stack([
        jnp.concatenate([w2h_w, rw_w], axis=1),
        jnp.concatenate([v2h_w, rv_w], axis=1),
        jnp.concatenate([h2h_w, rh_w], axis=1)], axis=0)          # (3, D, 5R)
    b_lstm = jnp.concatenate([w2h_b + v2h_b + h2h_b,
                              rw_b + rv_b + rh_b], axis=1)        # (1, 5R)

    frl_w, frl_b = p['fr_lin']
    hol_w, hol_b = p['ho_lin']
    fre_w, fre_b = p['fr_emb']
    hoe_w, hoe_b = p['ho_emb']
    aw, _ab = p['alpha']          # alpha bias cancels in softmax -> dropped
    a2h_w, a2h_b = p['att2h']

    W1 = jnp.stack([frl_w, hol_w], axis=0)    # (2, R, E)  no zero blocks
    W2 = jnp.stack([fre_w, hoe_w], axis=0)    # (2, E, H)

    bias_pack = jnp.concatenate(
        [b_lstm, frl_b, hol_b, fre_b, hoe_b, aw, a2h_b], axis=1)  # (1, 11R)

    return {
        'W_lstm': W_lstm.astype(w_dtype),
        'W1': W1.astype(w_dtype),
        'W2': W2.astype(w_dtype),
        'a2h_w': a2h_w.astype(w_dtype),
        'bias_pack': bias_pack.astype(F32),
    }


# ---------------------------------------------------------------------------
# Pure-JAX reference (same math; matmul operands cast to bf16 like the kernel)
# ---------------------------------------------------------------------------
def reference(xt, fc, att, patt, state, p):
    def lin(x, wb):
        return jnp.dot(x.astype(BF16), wb[0].astype(BF16),
                       preferred_element_type=F32) + wb[1]

    h0, c0 = state[0][0], state[1][0]
    R = h0.shape[-1]
    all_sums = lin(xt, p['w2h']) + lin(fc, p['v2h']) + lin(h0, p['h2h'])
    ig = jax.nn.sigmoid(all_sums[:, :R])
    fg = jax.nn.sigmoid(all_sums[:, R:2 * R])
    og = jax.nn.sigmoid(all_sums[:, 2 * R:3 * R])
    it = jnp.tanh(all_sums[:, 3 * R:4 * R])
    next_c = fg * c0 + ig * it
    tanh_c = jnp.tanh(next_c)
    next_h = og * tanh_c
    n5 = lin(xt, p['r_w2h']) + lin(fc, p['r_v2h']) + lin(h0, p['r_h2h'])
    fake = jax.nn.sigmoid(n5) * tanh_c

    fr = jnp.maximum(lin(fake, p['fr_lin']), 0.0)
    fr_emb = lin(fr, p['fr_emb'])
    hl = jnp.tanh(lin(next_h, p['ho_lin']))
    h_emb = lin(hl, p['ho_emb'])
    aw, ab = p['alpha']
    img_all = jnp.concatenate([fr[:, None, :], att], axis=1)
    img_all_emb = jnp.concatenate([fr_emb[:, None, :], patt], axis=1)
    hA = jnp.tanh(img_all_emb + h_emb[:, None, :])
    scores = jnp.sum(hA * aw[None, :, :], axis=-1) + ab[0, 0]
    PI = jax.nn.softmax(scores, axis=-1)
    vis = jnp.sum(PI[:, :, None] * img_all, axis=1)
    atten = vis + hl
    out = jnp.tanh(lin(atten, p['att2h']))
    return out, (next_h[None], next_c[None])


if __name__ == "__main__":
    B = 2          # batch
    D = 128        # input_encoding_size == rnn_size == att_hid_size
    A = 8          # att_size (number of attention regions)
    T = 4          # decode timesteps for the sequence (weights-resident) path

    key = jax.random.PRNGKey(0)
    k_in, k_p = jax.random.split(key)
    k1, k2, k3, k4, k5, k6 = jax.random.split(k_in, 6)

    xt_seq = jax.random.normal(k1, (T, B, D), F32)
    fc_feats = jax.random.normal(k2, (B, D), F32)
    att_feats = jax.random.normal(k3, (B, A, D), F32)
    p_att_feats = jax.random.normal(k4, (B, A, D), F32)
    state = (jax.random.normal(k5, (1, B, D), F32) * 0.1,
             jax.random.normal(k6, (1, B, D), F32) * 0.1)

    params = init_params(k_p, D, D, D)
    packed = pack_params(params)          # one-time packing / bf16 cast of weights

    # ---- single-step call (matches the torch module forward) ----
    out1, st1 = adaatt_core(xt_seq[0], fc_feats, att_feats, p_att_feats, state, packed)
    out1 = jax.block_until_ready(out1)

    # ---- T-step call: grid over timesteps keeps weights VMEM-resident ----
    out_seq, st_seq = adaatt_core_seq(xt_seq, fc_feats, att_feats, p_att_feats,
                                      state, packed)
    out_seq = jax.block_until_ready(out_seq)

    # Reference uses the same bf16-rounded attention features as the kernel DMAs.
    att_r = att_feats.astype(BF16).astype(F32)
    patt_r = p_att_feats.astype(BF16).astype(F32)
    # tolerance absorbs approx-reciprocal softmax + bf16/accumulation-order effects
    tol = dict(rtol=3e-3, atol=3e-3)

    ref1, ref_st1 = reference(xt_seq[0], fc_feats, att_r, patt_r, state, params)
    assert out1.shape == (B, D)
    assert st1[0].shape == (1, B, D) and st1[1].shape == (1, B, D)
    assert jnp.allclose(out1, ref1, **tol), "single-step attention output mismatch"
    assert jnp.allclose(st1[0], ref_st1[0], **tol), "single-step h state mismatch"
    assert jnp.allclose(st1[1], ref_st1[1], **tol), "single-step c state mismatch"

    st = state
    for t in range(T):
        ref_t, st = reference(xt_seq[t], fc_feats, att_r, patt_r, st, params)
        assert jnp.allclose(out_seq[t], ref_t, **tol), f"seq output mismatch @ t={t}"
    assert jnp.allclose(st_seq[0], st[0], **tol), "seq h state mismatch"
    assert jnp.allclose(st_seq[1], st[1], **tol), "seq c state mismatch"

    print("KERNEL_OK")
</pallas_src>

<mosaic_0001>
module attributes {stable_mosaic.version = 11 : i64} {
  func.func @adaatt_core_kernel(%arg0: i32, %arg1: memref<1x8x128xf32, #tpu.memory_space<vmem>>, %arg2: memref<8x128xf32, #tpu.memory_space<vmem>>, %arg3: memref<8x128xf32, #tpu.memory_space<vmem>>, %arg4: memref<8x128xf32, #tpu.memory_space<vmem>>, %arg5: memref<8x8x128xbf16, #tpu.memory_space<vmem>>, %arg6: memref<8x8x128xbf16, #tpu.memory_space<vmem>>, %arg7: memref<3x128x640xbf16, #tpu.memory_space<vmem>>, %arg8: memref<2x128x128xbf16, #tpu.memory_space<vmem>>, %arg9: memref<2x128x128xbf16, #tpu.memory_space<vmem>>, %arg10: memref<128x128xbf16, #tpu.memory_space<vmem>>, %arg11: memref<1x1408xf32, #tpu.memory_space<vmem>>, %arg12: memref<1x8x128xf32, #tpu.memory_space<vmem>>, %arg13: memref<8x128xf32, #tpu.memory_space<vmem>>, %arg14: memref<8x128xf32, #tpu.memory_space<vmem>>) attributes {dimension_semantics = [#tpu.dimension_semantics<arbitrary>], iteration_bounds = array<i64: 1>, scalar_prefetch = 0 : i64, scratch_operands = 0 : i64, tpu.core_type = #tpu.core_type<tc>, window_params = [{transform_indices = @transform_0, window_bounds = array<i64: 1, 8, 128>}, {pipeline_mode = #tpu.pipeline_mode<synchronous>, transform_indices = @transform_1, window_bounds = array<i64: 8, 128>}, {pipeline_mode = #tpu.pipeline_mode<synchronous>, transform_indices = @transform_2, window_bounds = array<i64: 8, 128>}, {pipeline_mode = #tpu.pipeline_mode<synchronous>, transform_indices = @transform_3, window_bounds = array<i64: 8, 128>}, {pipeline_mode = #tpu.pipeline_mode<synchronous>, transform_indices = @transform_4, window_bounds = array<i64: 8, 8, 128>}, {pipeline_mode = #tpu.pipeline_mode<synchronous>, transform_indices = @transform_5, window_bounds = array<i64: 8, 8, 128>}, {pipeline_mode = #tpu.pipeline_mode<synchronous>, transform_indices = @transform_6, window_bounds = array<i64: 3, 128, 640>}, {pipeline_mode = #tpu.pipeline_mode<synchronous>, transform_indices = @transform_7, window_bounds = array<i64: 2, 128, 128>}, {pipeline_mode = #tpu.pipeline_mode<synchronous>, transform_indices = @transform_8, window_bounds = array<i64: 2, 128, 128>}, {pipeline_mode = #tpu.pipeline_mode<synchronous>, transform_indices = @transform_9, window_bounds = array<i64: 128, 128>}, {pipeline_mode = #tpu.pipeline_mode<synchronous>, transform_indices = @transform_10, window_bounds = array<i64: 1, 1408>}, {transform_indices = @transform_11, window_bounds = array<i64: 1, 8, 128>}, {pipeline_mode = #tpu.pipeline_mode<synchronous>, transform_indices = @transform_12, window_bounds = array<i64: 8, 128>}, {pipeline_mode = #tpu.pipeline_mode<synchronous>, transform_indices = @transform_13, window_bounds = array<i64: 8, 128>}]} {
    %c0_i32 = arith.constant 0 : i32
    %0 = arith.cmpi eq, %arg0, %c0_i32 : i32
    %1 = arith.extui %0 : i1 to i32
    %c0_i32_0 = arith.constant 0 : i32
    %2 = arith.cmpi ne, %1, %c0_i32_0 : i32
    scf.if %2 {
      %c0_68 = arith.constant 0 : index
      %c0_69 = arith.constant 0 : index
      %142 = vector.load %arg3[%c0_68, %c0_69] : memref<8x128xf32, #tpu.memory_space<vmem>>, vector<8x128xf32>
      %c0_70 = arith.constant 0 : index
      %c0_71 = arith.constant 0 : index
      %143 = vector.load %arg13[%c0_70, %c0_71] : memref<8x128xf32, #tpu.memory_space<vmem>>, vector<8x128xf32>
      tpu.vector_store %arg13[%c0_70, %c0_71], %142 {strides = array<i32>} : memref<8x128xf32, #tpu.memory_space<vmem>>, vector<8x128xf32>,
      %c0_72 = arith.constant 0 : index
      %c0_73 = arith.constant 0 : index
      %144 = vector.load %arg4[%c0_72, %c0_73] : memref<8x128xf32, #tpu.memory_space<vmem>>, vector<8x128xf32>
      %c0_74 = arith.constant 0 : index
      %c0_75 = arith.constant 0 : index
      %145 = vector.load %arg14[%c0_74, %c0_75] : memref<8x128xf32, #tpu.memory_space<vmem>>, vector<8x128xf32>
      tpu.vector_store %arg14[%c0_74, %c0_75], %144 {strides = array<i32>} : memref<8x128xf32, #tpu.memory_space<vmem>>, vector<8x128xf32>,
    } else {
    }
    %c0 = arith.constant 0 : index
    %c0_1 = arith.constant 0 : index
    %c0_2 = arith.constant 0 : index
    %3 = vector.load %arg1[%c0, %c0_1, %c0_2] : memref<1x8x128xf32, #tpu.memory_space<vmem>>, vector<1x8x128xf32>
    %4 = vector.shape_cast %3 : vector<1x8x128xf32> to vector<8x128xf32>
    %c0_3 = arith.constant 0 : index
    %c0_4 = arith.constant 0 : index
    %5 = vector.load %arg2[%c0_3, %c0_4] : memref<8x128xf32, #tpu.memory_space<vmem>>, vector<8x128xf32>
    %c0_5 = arith.constant 0 : index
    %c0_6 = arith.constant 0 : index
    %6 = vector.load %arg13[%c0_5, %c0_6] : memref<8x128xf32, #tpu.memory_space<vmem>>, vector<8x128xf32>
    %c0_7 = arith.constant 0 : index
    %c0_8 = arith.constant 0 : index
    %7 = vector.load %arg14[%c0_7, %c0_8] : memref<8x128xf32, #tpu.memory_space<vmem>>, vector<8x128xf32>
    %c0_9 = arith.constant 0 : index
    %c0_10 = arith.constant 0 : index
    %8 = vector.load %arg11[%c0_9, %c0_10] : memref<1x1408xf32, #tpu.memory_space<vmem>>, vector<1x640xf32>
    %c0_11 = arith.constant 0 : index
    %c640 = arith.constant 640 : index
    %9 = vector.load %arg11[%c0_11, %c640] : memref<1x1408xf32, #tpu.memory_space<vmem>>, vector<1x128xf32>
    %c0_12 = arith.constant 0 : index
    %c768 = arith.constant 768 : index
    %10 = vector.load %arg11[%c0_12, %c768] : memref<1x1408xf32, #tpu.memory_space<vmem>>, vector<1x128xf32>
    %c0_13 = arith.constant 0 : index
    %c896 = arith.constant 896 : index
    %11 = vector.load %arg11[%c0_13, %c896] : memref<1x1408xf32, #tpu.memory_space<vmem>>, vector<1x128xf32>
    %c0_14 = arith.constant 0 : index
    %c1024 = arith.constant 1024 : index
    %12 = vector.load %arg11[%c0_14, %c1024] : memref<1x1408xf32, #tpu.memory_space<vmem>>, vector<1x128xf32>
    %c0_15 = arith.constant 0 : index
    %c1152 = arith.constant 1152 : index
    %13 = vector.load %arg11[%c0_15, %c1152] : memref<1x1408xf32, #tpu.memory_space<vmem>>, vector<1x128xf32>
    %c0_16 = arith.constant 0 : index
    %c1280 = arith.constant 1280 : index
    %14 = vector.load %arg11[%c0_16, %c1280] : memref<1x1408xf32, #tpu.memory_space<vmem>>, vector<1x128xf32>
    %c0_17 = arith.constant 0 : index
    %c0_18 = arith.constant 0 : index
    %c0_19 = arith.constant 0 : index
    %15 = vector.load %arg7[%c0_17, %c0_18, %c0_19] : memref<3x128x640xbf16, #tpu.memory_space<vmem>>, vector<1x128x640xbf16>
    %16 = vector.shape_cast %15 : vector<1x128x640xbf16> to vector<128x640xbf16>
    %17 = arith.truncf %4 : vector<8x128xf32> to vector<8x128xbf16>
    %cst = arith.constant dense<0.000000e+00> : vector<8x640xf32>
    %18 = tpu.matmul %17, %16, %cst {dimension_numbers = #tpu.dot_dimension_numbers<[1], [0], [0], [1], [0, 0, 1, 1], [], []>} : vector<8x128xbf16>, vector<128x640xbf16>, vector<8x640xf32> -> vector<8x640xf32>
    %c1 = arith.constant 1 : index
    %c0_20 = arith.constant 0 : index
    %c0_21 = arith.constant 0 : index
    %19 = vector.load %arg7[%c1, %c0_20, %c0_21] : memref<3x128x640xbf16, #tpu.memory_space<vmem>>, vector<1x128x640xbf16>
    %20 = vector.shape_cast %19 : vector<1x128x640xbf16> to vector<128x640xbf16>
    %21 = arith.truncf %5 : vector<8x128xf32> to vector<8x128xbf16>
    %cst_22 = arith.constant dense<0.000000e+00> : vector<8x640xf32>
    %22 = tpu.matmul %21, %20, %cst_22 {dimension_numbers = #tpu.dot_dimension_numbers<[1], [0], [0], [1], [0, 0, 1, 1], [], []>} : vector<8x128xbf16>, vector<128x640xbf16>, vector<8x640xf32> -> vector<8x640xf32>
    %23 = arith.addf %18, %22 : vector<8x640xf32>
    %c2 = arith.constant 2 : index
    %c0_23 = arith.constant 0 : index
    %c0_24 = arith.constant 0 : index
    %24 = vector.load %arg7[%c2, %c0_23, %c0_24] : memref<3x128x640xbf16, #tpu.memory_space<vmem>>, vector<1x128x640xbf16>
    %25 = vector.shape_cast %24 : vector<1x128x640xbf16> to vector<128x640xbf16>
    %26 = arith.truncf %6 : vector<8x128xf32> to vector<8x128xbf16>
    %cst_25 = arith.constant dense<0.000000e+00> : vector<8x640xf32>
    %27 = tpu.matmul %26, %25, %cst_25 {dimension_numbers = #tpu.dot_dimension_numbers<[1], [0], [0], [1], [0, 0, 1, 1], [], []>} : vector<8x128xbf16>, vector<128x640xbf16>, vector<8x640xf32> -> vector<8x640xf32>
    %28 = arith.addf %23, %27 : vector<8x640xf32>
    %29 = vector.broadcast %8 : vector<1x640xf32> to vector<8x640xf32>
    %30 = arith.addf %28, %29 : vector<8x640xf32>
    %31 = vector.extract_strided_slice %30 {offsets = [0, 0], sizes = [8, 128], strides = [1, 1]} : vector<8x640xf32> to vector<8x128xf32>
    %32 = arith.negf %31 : vector<8x128xf32>
    %33 = math.exp %32 : vector<8x128xf32>
    %cst_26 = arith.constant 1.000000e+00 : f32
    %34 = vector.broadcast %cst_26 : f32 to vector<8x128xf32>
    %35 = arith.addf %34, %33 : vector<8x128xf32>
    %36 = arith.divf %34, %35 : vector<8x128xf32>
    %37 = vector.extract_strided_slice %30 {offsets = [0, 128], sizes = [8, 128], strides = [1, 1]} : vector<8x640xf32> to vector<8x128xf32>
    %38 = arith.negf %37 : vector<8x128xf32>
    %39 = math.exp %38 : vector<8x128xf32>
    %cst_27 = arith.constant 1.000000e+00 : f32
    %40 = vector.broadcast %cst_27 : f32 to vector<8x128xf32>
    %41 = arith.addf %40, %39 : vector<8x128xf32>
    %42 = arith.divf %40, %41 : vector<8x128xf32>
    %43 = vector.extract_strided_slice %30 {offsets = [0, 256], sizes = [8, 128], strides = [1, 1]} : vector<8x640xf32> to vector<8x128xf32>
    %44 = arith.negf %43 : vector<8x128xf32>
    %45 = math.exp %44 : vector<8x128xf32>
    %cst_28 = arith.constant 1.000000e+00 : f32
    %46 = vector.broadcast %cst_28 : f32 to vector<8x128xf32>
    %47 = arith.addf %46, %45 : vector<8x128xf32>
    %48 = arith.divf %46, %47 : vector<8x128xf32>
    %49 = vector.extract_strided_slice %30 {offsets = [0, 384], sizes = [8, 128], strides = [1, 1]} : vector<8x640xf32> to vector<8x128xf32>
    %50 = math.tanh %49 : vector<8x128xf32>
    %51 = vector.extract_strided_slice %30 {offsets = [0, 512], sizes = [8, 128], strides = [1, 1]} : vector<8x640xf32> to vector<8x128xf32>
    %52 = arith.mulf %42, %7 : vector<8x128xf32>
    %53 = arith.mulf %36, %50 : vector<8x128xf32>
    %54 = arith.addf %52, %53 : vector<8x128xf32>
    %55 = math.tanh %54 : vector<8x128xf32>
    %56 = arith.mulf %48, %55 : vector<8x128xf32>
    %57 = arith.negf %51 : vector<8x128xf32>
    %58 = math.exp %57 : vector<8x128xf32>
    %cst_29 = arith.constant 1.000000e+00 : f32
    %59 = vector.broadcast %cst_29 : f32 to vector<8x128xf32>
    %60 = arith.addf %59, %58 : vector<8x128xf32>
    %61 = arith.divf %59, %60 : vector<8x128xf32>
    %62 = arith.mulf %61, %55 : vector<8x128xf32>
    %c0_30 = arith.constant 0 : index
    %c0_31 = arith.constant 0 : index
    %63 = vector.load %arg13[%c0_30, %c0_31] : memref<8x128xf32, #tpu.memory_space<vmem>>, vector<8x128xf32>
    tpu.vector_store %arg13[%c0_30, %c0_31], %56 {strides = array<i32>} : memref<8x128xf32, #tpu.memory_space<vmem>>, vector<8x128xf32>,
    %c0_32 = arith.constant 0 : index
    %c0_33 = arith.constant 0 : index
    %64 = vector.load %arg14[%c0_32, %c0_33] : memref<8x128xf32, #tpu.memory_space<vmem>>, vector<8x128xf32>
    tpu.vector_store %arg14[%c0_32, %c0_33], %54 {strides = array<i32>} : memref<8x128xf32, #tpu.memory_space<vmem>>, vector<8x128xf32>,
    %c0_34 = arith.constant 0 : index
    %c0_35 = arith.constant 0 : index
    %c0_36 = arith.constant 0 : index
    %65 = vector.load %arg8[%c0_34, %c0_35, %c0_36] : memref<2x128x128xbf16, #tpu.memory_space<vmem>>, vector<1x128x128xbf16>
    %66 = vector.shape_cast %65 : vector<1x128x128xbf16> to vector<128x128xbf16>
    %67 = arith.truncf %62 : vector<8x128xf32> to vector<8x128xbf16>
    %cst_37 = arith.constant dense<0.000000e+00> : vector<8x128xf32>
    %68 = tpu.matmul %67, %66, %cst_37 {dimension_numbers = #tpu.dot_dimension_numbers<[1], [0], [0], [1], [0, 0, 1, 1], [], []>} : vector<8x128xbf16>, vector<128x128xbf16>, vector<8x128xf32> -> vector<8x128xf32>
    %69 = vector.broadcast %9 : vector<1x128xf32> to vector<8x128xf32>
    %70 = arith.addf %68, %69 : vector<8x128xf32>
    %cst_38 = arith.constant 0.000000e+00 : f32
    %71 = vector.broadcast %cst_38 : f32 to vector<8x128xf32>
    %72 = arith.maximumf %70, %71 : vector<8x128xf32>
    %c1_39 = arith.constant 1 : index
    %c0_40 = arith.constant 0 : index
    %c0_41 = arith.constant 0 : index
    %73 = vector.load %arg8[%c1_39, %c0_40, %c0_41] : memref<2x128x128xbf16, #tpu.memory_space<vmem>>, vector<1x128x128xbf16>
    %74 = vector.shape_cast %73 : vector<1x128x128xbf16> to vector<128x128xbf16>
    %75 = arith.truncf %56 : vector<8x128xf32> to vector<8x128xbf16>
    %cst_42 = arith.constant dense<0.000000e+00> : vector<8x128xf32>
    %76 = tpu.matmul %75, %74, %cst_42 {dimension_numbers = #tpu.dot_dimension_numbers<[1], [0], [0], [1], [0, 0, 1, 1], [], []>} : vector<8x128xbf16>, vector<128x128xbf16>, vector<8x128xf32> -> vector<8x128xf32>
    %77 = vector.broadcast %10 : vector<1x128xf32> to vector<8x128xf32>
    %78 = arith.addf %76, %77 : vector<8x128xf32>
    %79 = math.tanh %78 : vector<8x128xf32>
    %c0_43 = arith.constant 0 : index
    %c0_44 = arith.constant 0 : index
    %c0_45 = arith.constant 0 : index
    %80 = vector.load %arg9[%c0_43, %c0_44, %c0_45] : memref<2x128x128xbf16, #tpu.memory_space<vmem>>, vector<1x128x128xbf16>
    %81 = vector.shape_cast %80 : vector<1x128x128xbf16> to vector<128x128xbf16>
    %82 = arith.truncf %72 : vector<8x128xf32> to vector<8x128xbf16>
    %cst_46 = arith.constant dense<0.000000e+00> : vector<8x128xf32>
    %83 = tpu.matmul %82, %81, %cst_46 {dimension_numbers = #tpu.dot_dimension_numbers<[1], [0], [0], [1], [0, 0, 1, 1], [], []>} : vector<8x128xbf16>, vector<128x128xbf16>, vector<8x128xf32> -> vector<8x128xf32>
    %84 = vector.broadcast %11 : vector<1x128xf32> to vector<8x128xf32>
    %85 = arith.addf %83, %84 : vector<8x128xf32>
    %c1_47 = arith.constant 1 : index
    %c0_48 = arith.constant 0 : index
    %c0_49 = arith.constant 0 : index
    %86 = vector.load %arg9[%c1_47, %c0_48, %c0_49] : memref<2x128x128xbf16, #tpu.memory_space<vmem>>, vector<1x128x128xbf16>
    %87 = vector.shape_cast %86 : vector<1x128x128xbf16> to vector<128x128xbf16>
    %88 = arith.truncf %79 : vector<8x128xf32> to vector<8x128xbf16>
    %cst_50 = arith.constant dense<0.000000e+00> : vector<8x128xf32>
    %89 = tpu.matmul %88, %87, %cst_50 {dimension_numbers = #tpu.dot_dimension_numbers<[1], [0], [0], [1], [0, 0, 1, 1], [], []>} : vector<8x128xbf16>, vector<128x128xbf16>, vector<8x128xf32> -> vector<8x128xf32>
    %90 = vector.broadcast %12 : vector<1x128xf32> to vector<8x128xf32>
    %91 = arith.addf %89, %90 : vector<8x128xf32>
    %92 = arith.addf %85, %91 : vector<8x128xf32>
    %93 = math.tanh %92 : vector<8x128xf32>
    %94 = vector.broadcast %13 : vector<1x128xf32> to vector<8x128xf32>
    %95 = arith.mulf %93, %94 : vector<8x128xf32>
    %cst_51 = arith.constant dense<0.000000e+00> : vector<8xf32>
    %96 = vector.multi_reduction <add>, %95, %cst_51 [1] : vector<8x128xf32> to vector<8xf32>
    %97 = vector.shape_cast %96 : vector<8xf32> to vector<8x1xf32>
    %c0_52 = arith.constant 0 : index
    %c0_53 = arith.constant 0 : index
    %c0_54 = arith.constant 0 : index
    %98 = vector.load %arg6[%c0_52, %c0_53, %c0_54] : memref<8x8x128xbf16, #tpu.memory_space<vmem>>, vector<8x8x128xbf16>
    %99 = arith.extf %98 : vector<8x8x128xbf16> to vector<8x8x128xf32>
    %100 = vector.shape_cast %91 : vector<8x128xf32> to vector<8x1x128xf32>
    %101 = vector.broadcast %100 : vector<8x1x128xf32> to vector<8x8x128xf32>
    %102 = arith.addf %99, %101 : vector<8x8x128xf32>
    %103 = math.tanh %102 : vector<8x8x128xf32>
    %104 = vector.shape_cast %13 : vector<1x128xf32> to vector<1x1x128xf32>
    %105 = vector.broadcast %104 : vector<1x1x128xf32> to vector<8x8x128xf32>
    %106 = arith.mulf %103, %105 : vector<8x8x128xf32>
    %cst_55 = arith.constant dense<0.000000e+00> : vector<8x8xf32>
    %107 = vector.multi_reduction <add>, %106, %cst_55 [2] : vector<8x8x128xf32> to vector<8x8xf32>
    %cst_56 = arith.constant dense<0xFF800000> : vector<8xf32>
    %108 = vector.multi_reduction <maximumf>, %107, %cst_56 [1] : vector<8x8xf32> to vector<8xf32>
    %109 = vector.shape_cast %108 : vector<8xf32> to vector<8x1xf32>
    %110 = arith.maximumf %97, %109 : vector<8x1xf32>
    %111 = arith.subf %97, %110 : vector<8x1xf32>
    %112 = math.exp %111 : vector<8x1xf32>
    %113 = vector.broadcast %110 : vector<8x1xf32> to vector<8x8xf32>
    %114 = arith.subf %107, %113 : vector<8x8xf32>
    %115 = math.exp %114 : vector<8x8xf32>
    %cst_57 = arith.constant dense<0.000000e+00> : vector<8xf32>
    %116 = vector.multi_reduction <add>, %115, %cst_57 [1] : vector<8x8xf32> to vector<8xf32>
    %117 = vector.shape_cast %116 : vector<8xf32> to vector<8x1xf32>
    %118 = arith.addf %112, %117 : vector<8x1xf32>
    %119 = tpu.reciprocal %118 {approx = true} : vector<8x1xf32> -> vector<8x1xf32>
    %120 = arith.mulf %112, %119 : vector<8x1xf32>
    %121 = vector.broadcast %119 : vector<8x1xf32> to vector<8x8xf32>
    %122 = arith.mulf %115, %121 : vector<8x8xf32>
    %c0_58 = arith.constant 0 : index
    %c0_59 = arith.constant 0 : index
    %c0_60 = arith.constant 0 : index
    %123 = vector.load %arg5[%c0_58, %c0_59, %c0_60] : memref<8x8x128xbf16, #tpu.memory_space<vmem>>, vector<8x8x128xbf16>
    %124 = arith.extf %123 : vector<8x8x128xbf16> to vector<8x8x128xf32>
    %125 = vector.broadcast %120 : vector<8x1xf32> to vector<8x128xf32>
    %126 = arith.mulf %125, %72 : vector<8x128xf32>
    %127 = vector.shape_cast %122 : vector<8x8xf32> to vector<8x8x1xf32>
    %128 = vector.broadcast %127 : vector<8x8x1xf32> to vector<8x8x128xf32>
    %129 = arith.mulf %128, %124 : vector<8x8x128xf32>
    %cst_61 = arith.constant dense<0.000000e+00> : vector<8x128xf32>
    %130 = vector.multi_reduction <add>, %129, %cst_61 [1] : vector<8x8x128xf32> to vector<8x128xf32>
    %131 = arith.addf %126, %130 : vector<8x128xf32>
    %132 = arith.addf %131, %79 : vector<8x128xf32>
    %c0_62 = arith.constant 0 : index
    %c0_63 = arith.constant 0 : index
    %133 = vector.load %arg10[%c0_62, %c0_63] : memref<128x128xbf16, #tpu.memory_space<vmem>>, vector<128x128xbf16>
    %134 = arith.truncf %132 : vector<8x128xf32> to vector<8x128xbf16>
    %cst_64 = arith.constant dense<0.000000e+00> : vector<8x128xf32>
    %135 = tpu.matmul %134, %133, %cst_64 {dimension_numbers = #tpu.dot_dimension_numbers<[1], [0], [0], [1], [0, 0, 1, 1], [], []>} : vector<8x128xbf16>, vector<128x128xbf16>, vector<8x128xf32> -> vector<8x128xf32>
    %136 = vector.broadcast %14 : vector<1x128xf32> to vector<8x128xf32>
    %137 = arith.addf %135, %136 : vector<8x128xf32>
    %138 = math.tanh %137 : vector<8x128xf32>
    %c0_65 = arith.constant 0 : index
    %c0_66 = arith.constant 0 : index
    %c0_67 = arith.constant 0 : index
    %139 = vector.load %arg12[%c0_65, %c0_66, %c0_67] : memref<1x8x128xf32, #tpu.memory_space<vmem>>, vector<1x8x128xf32>
    %140 = vector.shape_cast %139 : vector<1x8x128xf32> to vector<8x128xf32>
    %141 = vector.shape_cast %138 : vector<8x128xf32> to vector<1x8x128xf32>
    tpu.vector_store %arg12[%c0_65, %c0_66, %c0_67], %141 {strides = array<i32>} : memref<1x8x128xf32, #tpu.memory_space<vmem>>, vector<1x8x128xf32>,
    return
  }
  func.func @transform_0(%arg0: i32) -> (i32, i32, i32) {
    %c0_i32 = arith.constant 0 : i32
    %c0_i32_0 = arith.constant 0 : i32
    %c0_i32_1 = arith.constant 0 : i32
    return %arg0, %c0_i32, %c0_i32_0 : i32, i32, i32
  }
  func.func @transform_1(%arg0: i32) -> (i32, i32) {
    %c0_i32 = arith.constant 0 : i32
    %c0_i32_0 = arith.constant 0 : i32
    %c0_i32_1 = arith.constant 0 : i32
    return %c0_i32, %c0_i32_0 : i32, i32
  }
  func.func @transform_2(%arg0: i32) -> (i32, i32) {
    %c0_i32 = arith.constant 0 : i32
    %c0_i32_0 = arith.constant 0 : i32
    %c0_i32_1 = arith.constant 0 : i32
    return %c0_i32, %c0_i32_0 : i32, i32
  }
  func.func @transform_3(%arg0: i32) -> (i32, i32) {
    %c0_i32 = arith.constant 0 : i32
    %c0_i32_0 = arith.constant 0 : i32
    %c0_i32_1 = arith.constant 0 : i32
    return %c0_i32, %c0_i32_0 : i32, i32
  }
  func.func @transform_4(%arg0: i32) -> (i32, i32, i32) {
    %c0_i32 = arith.constant 0 : i32
    %c0_i32_0 = arith.constant 0 : i32
    %c0_i32_1 = arith.constant 0 : i32
    %c0_i32_2 = arith.constant 0 : i32
    return %c0_i32, %c0_i32_0, %c0_i32_1 : i32, i32, i32
  }
  func.func @transform_5(%arg0: i32) -> (i32, i32, i32) {
    %c0_i32 = arith.constant 0 : i32
    %c0_i32_0 = arith.constant 0 : i32
    %c0_i32_1 = arith.constant 0 : i32
    %c0_i32_2 = arith.constant 0 : i32
    return %c0_i32, %c0_i32_0, %c0_i32_1 : i32, i32, i32
  }
  func.func @transform_6(%arg0: i32) -> (i32, i32, i32) {
    %c0_i32 = arith.constant 0 : i32
    %c0_i32_0 = arith.constant 0 : i32
    %c0_i32_1 = arith.constant 0 : i32
    %c0_i32_2 = arith.constant 0 : i32
    return %c0_i32, %c0_i32_0, %c0_i32_1 : i32, i32, i32
  }
  func.func @transform_7(%arg0: i32) -> (i32, i32, i32) {
    %c0_i32 = arith.constant 0 : i32
    %c0_i32_0 = arith.constant 0 : i32
    %c0_i32_1 = arith.constant 0 : i32
    %c0_i32_2 = arith.constant 0 : i32
    return %c0_i32, %c0_i32_0, %c0_i32_1 : i32, i32, i32
  }
  func.func @transform_8(%arg0: i32) -> (i32, i32, i32) {
    %c0_i32 = arith.constant 0 : i32
    %c0_i32_0 = arith.constant 0 : i32
    %c0_i32_1 = arith.constant 0 : i32
    %c0_i32_2 = arith.constant 0 : i32
    return %c0_i32, %c0_i32_0, %c0_i32_1 : i32, i32, i32
  }
  func.func @transform_9(%arg0: i32) -> (i32, i32) {
    %c0_i32 = arith.constant 0 : i32
    %c0_i32_0 = arith.constant 0 : i32
    %c0_i32_1 = arith.constant 0 : i32
    return %c0_i32, %c0_i32_0 : i32, i32
  }
  func.func @transform_10(%arg0: i32) -> (i32, i32) {
    %c0_i32 = arith.constant 0 : i32
    %c0_i32_0 = arith.constant 0 : i32
    %c0_i32_1 = arith.constant 0 : i32
    return %c0_i32, %c0_i32_0 : i32, i32
  }
  func.func @transform_11(%arg0: i32) -> (i32, i32, i32) {
    %c0_i32 = arith.constant 0 : i32
    %c0_i32_0 = arith.constant 0 : i32
    %c0_i32_1 = arith.constant 0 : i32
    return %arg0, %c0_i32, %c0_i32_0 : i32, i32, i32
  }
  func.func @transform_12(%arg0: i32) -> (i32, i32) {
    %c0_i32 = arith.constant 0 : i32
    %c0_i32_0 = arith.constant 0 : i32
    %c0_i32_1 = arith.constant 0 : i32
    return %c0_i32, %c0_i32_0 : i32, i32
  }
  func.func @transform_13(%arg0: i32) -> (i32, i32) {
    %c0_i32 = arith.constant 0 : i32
    %c0_i32_0 = arith.constant 0 : i32
    %c0_i32_1 = arith.constant 0 : i32
    return %c0_i32, %c0_i32_0 : i32, i32
  }
}

</mosaic_0001>

<llo_original>
// kernel: tpu_custom_call.1
$region0: #{tpu_custom_call.1}
  #allocation0 [shape = 'u32[]', space=smem, size = 0x4, offset = 0x4, fixed_abs, tag = 'smem constant byte address 0x4 - core index']
  #allocation1 [shape = 'u32[72,128]{1,0:T(1,128)}', space=vmem, size = 0x9000, scoped, tag = 'internal scratch']
  %s0 = inlined_call_operand.hbm [shape: f32[1,8,128], index: 0, kind: input, shape index: {}]
  %s1 = inlined_call_operand.hbm [shape: f32[8,128], index: 1, kind: input, shape index: {}]
  %s2 = inlined_call_operand.hbm [shape: f32[8,128], index: 2, kind: input, shape index: {}]
  %s3 = inlined_call_operand.hbm [shape: f32[8,128], index: 3, kind: input, shape index: {}]
  %s4 = inlined_call_operand.hbm [shape: bf16[8,8,128], index: 4, kind: input, shape index: {}]
  %s5 = inlined_call_operand.hbm [shape: bf16[8,8,128], index: 5, kind: input, shape index: {}]
  %s6 = inlined_call_operand.hbm [shape: bf16[3,128,640], index: 6, kind: input, shape index: {}]
  %s7 = inlined_call_operand.hbm [shape: bf16[2,128,128], index: 7, kind: input, shape index: {}]
  %s8 = inlined_call_operand.hbm [shape: bf16[2,128,128], index: 8, kind: input, shape index: {}]
  %s9 = inlined_call_operand.hbm [shape: bf16[128,128], index: 9, kind: input, shape index: {}]
  %s10 = inlined_call_operand.hbm [shape: f32[1,1408], index: 10, kind: input, shape index: {}]
  %s11 = inlined_call_operand.hbm [shape: f32[1,8,128], index: 11, kind: output, shape index: {0}]
  %s12 = inlined_call_operand.hbm [shape: f32[8,128], index: 12, kind: output, shape index: {1}]
  %s13 = inlined_call_operand.hbm [shape: f32[8,128], index: 13, kind: output, shape index: {2}]
  %14 = xla_tuple %s11, %s12, %s13
  %s15 = sld [smem:[#allocation0]]
  $region118: #{tpu_custom_call.1} parent=0
    _
  %s17 = ssub.s32 1, %s15
  %s18 = scalar_select 0, %s17, %s15
  $region1: #{tpu_custom_call.1} parent=0
    #allocation2 [shape = 'u8[4096]{0}', space=vmem, size = 0x1000, scoped, tag = 'input window, operand 0, single buffered']
    #allocation3 [shape = 's32[1]{0}', space=sflag, size = 0x4, scoped, tag = 'scoped memory for tpu_custom_call.1']
    #allocation4 [shape = 's32[1]{0}', space=sflag, size = 0x4, scoped, tag = 'scoped memory for tpu_custom_call.1']
    #allocation5 [shape = 'u8[4096]{0}', space=vmem, size = 0x1000, scoped, tag = 'input window, operand 1, single buffered']
    #allocation6 [shape = 's32[1]{0}', space=sflag, size = 0x4, scoped, tag = 'scoped memory for tpu_custom_call.1']
    #allocation7 [shape = 'u8[4096]{0}', space=vmem, size = 0x1000, scoped, tag = 'input window, operand 2, single buffered']
    #allocation8 [shape = 'u8[4096]{0}', space=vmem, size = 0x1000, scoped, tag = 'input window, operand 3, single buffered']
    #allocation9 [shape = 's32[1]{0}', space=sflag, size = 0x4, scoped, tag = 'scoped memory for tpu_custom_call.1']
    #allocation10 [shape = 'u8[16384]{0}', space=vmem, size = 0x4000, scoped, tag = 'input window, operand 4, single buffered']
    #allocation11 [shape = 'u8[16384]{0}', space=vmem, size = 0x4000, scoped, tag = 'input window, operand 5, single buffered']
    #allocation12 [shape = 's32[1]{0}', space=sflag, size = 0x4, scoped, tag = 'scoped memory for tpu_custom_call.1']
    #allocation13 [shape = 'u8[491520]{0}', space=vmem, size = 0x78000, scoped, tag = 'input window, operand 6, single buffered']
    #allocation14 [shape = 'u8[65536]{0}', space=vmem, size = 0x10000, scoped, tag = 'input window, operand 7, single buffered']
    #allocation15 [shape = 's32[1]{0}', space=sflag, size = 0x4, scoped, tag = 'scoped memory for tpu_custom_call.1']
    #allocation16 [shape = 'u8[65536]{0}', space=vmem, size = 0x10000, scoped, tag = 'input window, operand 8, single buffered']
    #allocation17 [shape = 'u8[32768]{0}', space=vmem, size = 0x8000, scoped, tag = 'input window, operand 9, single buffered']
    #allocation18 [shape = 's32[1]{0}', space=sflag, size = 0x4, scoped, tag = 'scoped memory for tpu_custom_call.1']
    #allocation19 [shape = 'u8[5632]{0}', space=vmem, size = 0x1800, scoped, tag = 'input window, operand 10, single buffered']
    #allocation20 [shape = 'u8[4096]{0}', space=vmem, size = 0x1000, scoped, tag = 'output window, operand 0, single buffered']
    #allocation21 [shape = 'u8[4096]{0}', space=vmem, size = 0x1000, scoped, tag = 'output window, operand 1, single buffered']
    #allocation22 [shape = 's32[1]{0}', space=sflag, size = 0x4, scoped, tag = 'scoped memory for tpu_custom_call.1']
    #allocation23 [shape = 'u8[4096]{0}', space=vmem, size = 0x1000, scoped, tag = 'output window, operand 2, single buffered']
    %19 = vsyncpa [#allocation3], 0
    %20 = vsyncpa [#allocation6], 0
    %21 = vsyncpa [#allocation9], 0
    %22 = vsyncpa [#allocation12], 0
    %23 = vsyncpa [#allocation15], 0
    %24 = vsyncpa [#allocation18], 0
    %25 = vsyncpa [#allocation4], 0
    %26 = vsyncpa [#allocation22], 0
    // Predicated region
    $region2: #{tpu_custom_call.1} parent=1 // pred_check
      _
    $region3: #{tpu_custom_call.1} parent=1 // pred_check_branch
      %28 = sbr.rel (0) target = $region5
    $region4: #{tpu_custom_call.1} parent=1 // pred_region
      %30 = vsyncadd [#allocation3], 0
      %s32 = sshll.u32 %s0, 4
      %s33 = int_to_ptr.hbm [resolvable:$true] %s32
      %s34 = sshll.u32 [#allocation2], 4
      %s35 = int_to_ptr.vmem [resolvable:$true] %s34
      %37 = dma.hbm_to_vmem [thread:$0]  %s33, 128, %s35, [#allocation3]
    $region5: #{tpu_custom_call.1} parent=1 // pred_fallthru
      _
    // Predicated region
    $region6: #{tpu_custom_call.1} parent=1 // pred_check
      _
    $region7: #{tpu_custom_call.1} parent=1 // pred_check_branch
      %39 = sbr.rel (0) target = $region9
    $region8: #{tpu_custom_call.1} parent=1 // pred_region
      %41 = vsyncadd [#allocation6], 0
      %s43 = sshll.u32 %s1, 4
      %s44 = int_to_ptr.hbm [resolvable:$true] %s43
      %s45 = sshll.u32 [#allocation5], 4
      %s46 = int_to_ptr.vmem [resolvable:$true] %s45
      %48 = dma.hbm_to_vmem [thread:$0]  %s44, 128, %s46, [#allocation6]
    $region9: #{tpu_custom_call.1} parent=1 // pred_fallthru
      _
    // Predicated region
    $region10: #{tpu_custom_call.1} parent=1 // pred_check
      _
    $region11: #{tpu_custom_call.1} parent=1 // pred_check_branch
      %50 = sbr.rel (0) target = $region13
    $region12: #{tpu_custom_call.1} parent=1 // pred_region
      %52 = vsyncadd [#allocation6], 0
      %s54 = sshll.u32 %s2, 4
      %s55 = int_to_ptr.hbm [resolvable:$true] %s54
      %s56 = sshll.u32 [#allocation7], 4
      %s57 = int_to_ptr.vmem [resolvable:$true] %s56
      %59 = dma.hbm_to_vmem [thread:$0]  %s55, 128, %s57, [#allocation6]
    $region13: #{tpu_custom_call.1} parent=1 // pred_fallthru
      _
    // Predicated region
    $region14: #{tpu_custom_call.1} parent=1 // pred_check
      _
    $region15: #{tpu_custom_call.1} parent=1 // pred_check_branch
      %61 = sbr.rel (0) target = $region17
    $region16: #{tpu_custom_call.1} parent=1 // pred_region
      %63 = vsyncadd [#allocation9], 0
      %s65 = sshll.u32 %s3, 4
      %s66 = int_to_ptr.hbm [resolvable:$true] %s65
      %s67 = sshll.u32 [#allocation8], 4
      %s68 = int_to_ptr.vmem [resolvable:$true] %s67
      %70 = dma.hbm_to_vmem [thread:$0]  %s66, 128, %s68, [#allocation9]
    $region17: #{tpu_custom_call.1} parent=1 // pred_fallthru
      _
    // Predicated region
    $region18: #{tpu_custom_call.1} parent=1 // pred_check
      _
    $region19: #{tpu_custom_call.1} parent=1 // pred_check_branch
      %72 = sbr.rel (0) target = $region21
    $region20: #{tpu_custom_call.1} parent=1 // pred_region
      %74 = vsyncadd [#allocation9], 0
      %s75 = sshll.u32 %s4, 4
      %s76 = int_to_ptr.hbm [resolvable:$true] %s75
      %s77 = sshll.u32 [#allocation10], 4
      %s78 = int_to_ptr.vmem [resolvable:$true] %s77
      %83 = dma.hbm_to_vmem [thread:$0]  %s76, 512, %s78, [#allocation9], 64, 64, 4
    $region21: #{tpu_custom_call.1} parent=1 // pred_fallthru
      _
    // Predicated region
    $region22: #{tpu_custom_call.1} parent=1 // pred_check
      _
    $region23: #{tpu_custom_call.1} parent=1 // pred_check_branch
      %85 = sbr.rel (0) target = $region25
    $region24: #{tpu_custom_call.1} parent=1 // pred_region
      %87 = vsyncadd [#allocation12], 0
      %s88 = sshll.u32 %s5, 4
      %s89 = int_to_ptr.hbm [resolvable:$true] %s88
      %s90 = sshll.u32 [#allocation11], 4
      %s91 = int_to_ptr.vmem [resolvable:$true] %s90
      %96 = dma.hbm_to_vmem [thread:$0]  %s89, 512, %s91, [#allocation12], 64, 64, 4
    $region25: #{tpu_custom_call.1} parent=1 // pred_fallthru
      _
    // Predicated region
    $region26: #{tpu_custom_call.1} parent=1 // pred_check
      _
    $region27: #{tpu_custom_call.1} parent=1 // pred_check_branch
      %98 = sbr.rel (0) target = $region29
    $region28: #{tpu_custom_call.1} parent=1 // pred_region
      %100 = vsyncadd [#allocation12], 0
      %s101 = sshll.u32 %s6, 4
      %s102 = int_to_ptr.hbm [resolvable:$true] %s101
      %s103 = sshll.u32 [#allocation13], 4
      %s104 = int_to_ptr.vmem [resolvable:$true] %s103
      %109 = dma.hbm_to_vmem [thread:$0]  %s102, 15360, %s104, [#allocation12], 320, 320, 20
    $region29: #{tpu_custom_call.1} parent=1 // pred_fallthru
      _
    // Predicated region
    $region30: #{tpu_custom_call.1} parent=1 // pred_check
      _
    $region31: #{tpu_custom_call.1} parent=1 // pred_check_branch
      %111 = sbr.rel (0) target = $region33
    $region32: #{tpu_custom_call.1} parent=1 // pred_region
      %113 = vsyncadd [#allocation15], 0
      %s114 = sshll.u32 %s7, 4
      %s115 = int_to_ptr.hbm [resolvable:$true] %s114
      %s116 = sshll.u32 [#allocation14], 4
      %s117 = int_to_ptr.vmem [resolvable:$true] %s116
      %122 = dma.hbm_to_vmem [thread:$0]  %s115, 2048, %s117, [#allocation15], 64, 64, 4
    $region33: #{tpu_custom_call.1} parent=1 // pred_fallthru
      _
    // Predicated region
    $region34: #{tpu_custom_call.1} parent=1 // pred_check
      _
    $region35: #{tpu_custom_call.1} parent=1 // pred_check_branch
      %124 = sbr.rel (0) target = $region37
    $region36: #{tpu_custom_call.1} parent=1 // pred_region
      %126 = vsyncadd [#allocation15], 0
      %s127 = sshll.u32 %s8, 4
      %s128 = int_to_ptr.hbm [resolvable:$true] %s127
      %s129 = sshll.u32 [#allocation16], 4
      %s130 = int_to_ptr.vmem [resolvable:$true] %s129
      %135 = dma.hbm_to_vmem [thread:$0]  %s128, 2048, %s130, [#allocation15], 64, 64, 4
    $region37: #{tpu_custom_call.1} parent=1 // pred_fallthru
      _
    // Predicated region
    $region38: #{tpu_custom_call.1} parent=1 // pred_check
      _
    $region39: #{tpu_custom_call.1} parent=1 // pred_check_branch
      %137 = sbr.rel (0) target = $region41
    $region40: #{tpu_custom_call.1} parent=1 // pred_region
      %139 = vsyncadd [#allocation18], 0
      %s140 = sshll.u32 %s9, 4
      %s141 = int_to_ptr.hbm [resolvable:$true] %s140
      %s142 = sshll.u32 [#allocation17], 4
      %s143 = int_to_ptr.vmem [resolvable:$true] %s142
      %148 = dma.hbm_to_vmem [thread:$0]  %s141, 1024, %s143, [#allocation18], 64, 64, 4
    $region41: #{tpu_custom_call.1} parent=1 // pred_fallthru
      _
    // Predicated region
    $region42: #{tpu_custom_call.1} parent=1 // pred_check
      _
    $region43: #{tpu_custom_call.1} parent=1 // pred_check_branch
      %150 = sbr.rel (0) target = $region45
    $region44: #{tpu_custom_call.1} parent=1 // pred_region
      %152 = vsyncadd [#allocation18], 0
      %s154 = sshll.u32 %s10, 4
      %s155 = int_to_ptr.hbm [resolvable:$true] %s154
      %s156 = sshll.u32 [#allocation19], 4
      %s157 = int_to_ptr.vmem [resolvable:$true] %s156
      %159 = dma.hbm_to_vmem [thread:$0]  %s155, 176, %s157, [#allocation18]
    $region45: #{tpu_custom_call.1} parent=1 // pred_fallthru
      _
    // Predicated region
    $region46: #{tpu_custom_call.1} parent=1 // pred_check
      _
    $region47: #{tpu_custom_call.1} parent=1 // pred_check_branch
      %161 = sbr.rel (0) target = $region49
    $region48: #{tpu_custom_call.1} parent=1 // pred_region
      %163 = dma.done [#allocation3], 128
    $region49: #{tpu_custom_call.1} parent=1 // pred_fallthru
      _
    // Predicated region
    $region50: #{tpu_custom_call.1} parent=1 // pred_check
      _
    $region51: #{tpu_custom_call.1} parent=1 // pred_check_branch
      %165 = sbr.rel (0) target = $region53
    $region52: #{tpu_custom_call.1} parent=1 // pred_region
      %167 = dma.done [#allocation6], 128
    $region53: #{tpu_custom_call.1} parent=1 // pred_fallthru
      _
    // Predicated region
    $region54: #{tpu_custom_call.1} parent=1 // pred_check
      _
    $region55: #{tpu_custom_call.1} parent=1 // pred_check_branch
      %169 = sbr.rel (0) target = $region57
    $region56: #{tpu_custom_call.1} parent=1 // pred_region
      %171 = dma.done [#allocation6], 128
    $region57: #{tpu_custom_call.1} parent=1 // pred_fallthru
      _
    // Predicated region
    $region58: #{tpu_custom_call.1} parent=1 // pred_check
      _
    $region59: #{tpu_custom_call.1} parent=1 // pred_check_branch
      %173 = sbr.rel (0) target = $region61
    $region60: #{tpu_custom_call.1} parent=1 // pred_region
      %175 = dma.done [#allocation9], 128
    $region61: #{tpu_custom_call.1} parent=1 // pred_fallthru
      _
    // Predicated region
    $region62: #{tpu_custom_call.1} parent=1 // pred_check
      _
    $region63: #{tpu_custom_call.1} parent=1 // pred_check_branch
      %177 = sbr.rel (0) target = $region65
    $region64: #{tpu_custom_call.1} parent=1 // pred_region
      %179 = dma.done [#allocation9], 512
    $region65: #{tpu_custom_call.1} parent=1 // pred_fallthru
      _
    // Predicated region
    $region66: #{tpu_custom_call.1} parent=1 // pred_check
      _
    $region67: #{tpu_custom_call.1} parent=1 // pred_check_branch
      %181 = sbr.rel (0) target = $region69
    $region68: #{tpu_custom_call.1} parent=1 // pred_region
      %183 = dma.done [#allocation12], 512
    $region69: #{tpu_custom_call.1} parent=1 // pred_fallthru
      _
    // Predicated region
    $region70: #{tpu_custom_call.1} parent=1 // pred_check
      _
    $region71: #{tpu_custom_call.1} parent=1 // pred_check_branch
      %185 = sbr.rel (0) target = $region73
    $region72: #{tpu_custom_call.1} parent=1 // pred_region
      %187 = dma.done [#allocation12], 15360
    $region73: #{tpu_custom_call.1} parent=1 // pred_fallthru
      _
    // Predicated region
    $region74: #{tpu_custom_call.1} parent=1 // pred_check
      _
    $region75: #{tpu_custom_call.1} parent=1 // pred_check_branch
      %189 = sbr.rel (0) target = $region77
    $region76: #{tpu_custom_call.1} parent=1 // pred_region
      %191 = dma.done [#allocation15], 2048
    $region77: #{tpu_custom_call.1} parent=1 // pred_fallthru
      _
    // Predicated region
    $region78: #{tpu_custom_call.1} parent=1 // pred_check
      _
    $region79: #{tpu_custom_call.1} parent=1 // pred_check_branch
      %193 = sbr.rel (0) target = $region81
    $region80: #{tpu_custom_call.1} parent=1 // pred_region
      %195 = dma.done [#allocation15], 2048
    $region81: #{tpu_custom_call.1} parent=1 // pred_fallthru
      _
    // Predicated region
    $region82: #{tpu_custom_call.1} parent=1 // pred_check
      _
    $region83: #{tpu_custom_call.1} parent=1 // pred_check_branch
      %197 = sbr.rel (0) target = $region85
    $region84: #{tpu_custom_call.1} parent=1 // pred_region
      %199 = dma.done [#allocation18], 1024
    $region85: #{tpu_custom_call.1} parent=1 // pred_fallthru
      _
    // Predicated region
    $region86: #{tpu_custom_call.1} parent=1 // pred_check
      _
    $region87: #{tpu_custom_call.1} parent=1 // pred_check_branch
      %201 = sbr.rel (0) target = $region89
    $region88: #{tpu_custom_call.1} parent=1 // pred_region
      %203 = dma.done [#allocation18], 176
    $region89: #{tpu_custom_call.1} parent=1 // pred_fallthru
      _
    %p204 = scmp.eq.s32.totalorder 0, 0
    // Predicated region
    $region90: #{tpu_custom_call.1} parent=1 // pred_check
      %p205 = pneg %p204
    $region91: #{tpu_custom_call.1} parent=1 // pred_check_branch
      %207 = sbr.rel (%p205) target = $region93
    $region92: #{tpu_custom_call.1} parent=1 // pred_region
      %v208 = vld [vmem:[#allocation7] sm:$0xff]
      %209 = vst [vmem:[#allocation21] sm:$0xff] %v208
      %v210 = vld [vmem:[#allocation8] sm:$0xff]
      %211 = vst [vmem:[#allocation23] sm:$0xff] %v210
    $region93: #{tpu_custom_call.1} parent=1 // pred_fallthru
      _
    %v212 = vld [vmem:[#allocation2] sm:$0xff]
    %v213 = vld [vmem:[#allocation5] sm:$0xff]
    %v214 = vld [vmem:[#allocation21] sm:$0xff]
    %v215 = vld [vmem:[#allocation23] sm:$0xff]
    %v216 = vld [vmem:[#allocation19] sm:$0x1f]
    %v217 = vld [vmem:[#allocation19 + $0x5] sm:$0x1]
    %v218 = vld [vmem:[#allocation19 + $0x6] sm:$0x1]
    %v219 = vld [vmem:[#allocation19 + $0x7] sm:$0x1]
    %v220 = vld [vmem:[#allocation19 + $0x8] sm:$0x1]
    %v221 = vld [vmem:[#allocation19 + $0x9] sm:$0x1]
    %v222 = vld [vmem:[#allocation19 + $0xa] sm:$0x1]
    %v223 = vld [vmem:[#allocation13] sm:$0xff]
    %v224 = vld [vmem:[#allocation13 + $0x8] sm:$0xff]
    %v225 = vld [vmem:[#allocation13 + $0x10] sm:$0xf]
    %v226 = vld [vmem:[#allocation13 + $0x14] sm:$0xff]
    %v227 = vld [vmem:[#allocation13 + $0x1c] sm:$0xff]
    %v228 = vld [vmem:[#allocation13 + $0x24] sm:$0xf]
    %v229 = vld [vmem:[#allocation13 + $0x28] sm:$0xff]
    %v230 = vld [vmem:[#allocation13 + $0x30] sm:$0xff]
    %v231 = vld [vmem:[#allocation13 + $0x38] sm:$0xf]
    %v232 = vld [vmem:[#allocation13 + $0x3c] sm:$0xff]
    %v233 = vld [vmem:[#allocation13 + $0x44] sm:$0xff]
    %v234 = vld [vmem:[#allocation13 + $0x4c] sm:$0xf]
    %v235 = vld [vmem:[#allocation13 + $0x50] sm:$0xff]
    %v236 = vld [vmem:[#allocation13 + $0x58] sm:$0xff]
    %v237 = vld [vmem:[#allocation13 + $0x60] sm:$0xf]
    %v238 = vld [vmem:[#allocation13 + $0x64] sm:$0xff]
    %v239 = vld [vmem:[#allocation13 + $0x6c] sm:$0xff]
    %v240 = vld [vmem:[#allocation13 + $0x74] sm:$0xf]
    %v241 = vld [vmem:[#allocation13 + $0x78] sm:$0xff]
    %v242 = vld [vmem:[#allocation13 + $0x80] sm:$0xff]
    %v243 = vld [vmem:[#allocation13 + $0x88] sm:$0xf]
    %v244 = vld [vmem:[#allocation13 + $0x8c] sm:$0xff]
    %v245 = vld [vmem:[#allocation13 + $0x94] sm:$0xff]
    %v246 = vld [vmem:[#allocation13 + $0x9c] sm:$0xf]
    %v247 = vld [vmem:[#allocation13 + $0xa0] sm:$0xff]
    %v248 = vld [vmem:[#allocation13 + $0xa8] sm:$0xff]
    %v249 = vld [vmem:[#allocation13 + $0xb0] sm:$0xf]
    %v250 = vld [vmem:[#allocation13 + $0xb4] sm:$0xff]
    %v251 = vld [vmem:[#allocation13 + $0xbc] sm:$0xff]
    %v252 = vld [vmem:[#allocation13 + $0xc4] sm:$0xf]
    %v253 = vld [vmem:[#allocation13 + $0xc8] sm:$0xff]
    %v254 = vld [vmem:[#allocation13 + $0xd0] sm:$0xff]
    %v255 = vld [vmem:[#allocation13 + $0xd8] sm:$0xf]
    %v256 = vld [vmem:[#allocation13 + $0xdc] sm:$0xff]
    %v257 = vld [vmem:[#allocation13 + $0xe4] sm:$0xff]
    %v258 = vld [vmem:[#allocation13 + $0xec] sm:$0xf]
    %v259 = vld [vmem:[#allocation13 + $0xf0] sm:$0xff]
    %v260 = vld [vmem:[#allocation13 + $0xf8] sm:$0xff]
    %v261 = vld [vmem:[#allocation13 + $0x100] sm:$0xf]
    %v262 = vld [vmem:[#allocation13 + $0x104] sm:$0xff]
    %v263 = vld [vmem:[#allocation13 + $0x10c] sm:$0xff]
    %v264 = vld [vmem:[#allocation13 + $0x114] sm:$0xf]
    %v265 = vld [vmem:[#allocation13 + $0x118] sm:$0xff]
    %v266 = vld [vmem:[#allocation13 + $0x120] sm:$0xff]
    %v267 = vld [vmem:[#allocation13 + $0x128] sm:$0xf]
    %v268 = vld [vmem:[#allocation13 + $0x12c] sm:$0xff]
    %v269 = vld [vmem:[#allocation13 + $0x134] sm:$0xff]
    %v270 = vld [vmem:[#allocation13 + $0x13c] sm:$0xf]
    %v271 = vpack.c.bf16 %v212, %v212
    %s272 = scalar_lea.vmem [#allocation13], 320
    %v273 = vld [vmem:[%s272] sm:$0xff]
    %v274 = vld [vmem:[%s272 + $0x8] sm:$0xff]
    %v275 = vld [vmem:[%s272 + $0x10] sm:$0xf]
    %v276 = vld [vmem:[%s272 + $0x14] sm:$0xff]
    %v277 = vld [vmem:[%s272 + $0x1c] sm:$0xff]
    %v278 = vld [vmem:[%s272 + $0x24] sm:$0xf]
    %v279 = vld [vmem:[%s272 + $0x28] sm:$0xff]
    %v280 = vld [vmem:[%s272 + $0x30] sm:$0xff]
    %v281 = vld [vmem:[%s272 + $0x38] sm:$0xf]
    %v282 = vld [vmem:[%s272 + $0x3c] sm:$0xff]
    %v283 = vld [vmem:[%s272 + $0x44] sm:$0xff]
    %v284 = vld [vmem:[%s272 + $0x4c] sm:$0xf]
    %v285 = vld [vmem:[%s272 + $0x50] sm:$0xff]
    %v286 = vld [vmem:[%s272 + $0x58] sm:$0xff]
    %v287 = vld [vmem:[%s272 + $0x60] sm:$0xf]
    %v288 = vld [vmem:[%s272 + $0x64] sm:$0xff]
    %v289 = vld [vmem:[%s272 + $0x6c] sm:$0xff]
    %v290 = vld [vmem:[%s272 + $0x74] sm:$0xf]
    %v291 = vld [vmem:[%s272 + $0x78] sm:$0xff]
    %v292 = vld [vmem:[%s272 + $0x80] sm:$0xff]
    %v293 = vld [vmem:[%s272 + $0x88] sm:$0xf]
    %v294 = vld [vmem:[%s272 + $0x8c] sm:$0xff]
    %v295 = vld [vmem:[%s272 + $0x94] sm:$0xff]
    %v296 = vld [vmem:[%s272 + $0x9c] sm:$0xf]
    %v297 = vld [vmem:[%s272 + $0xa0] sm:$0xff]
    %v298 = vld [vmem:[%s272 + $0xa8] sm:$0xff]
    %v299 = vld [vmem:[%s272 + $0xb0] sm:$0xf]
    %v300 = vld [vmem:[%s272 + $0xb4] sm:$0xff]
    %v301 = vld [vmem:[%s272 + $0xbc] sm:$0xff]
    %v302 = vld [vmem:[%s272 + $0xc4] sm:$0xf]
    %v303 = vld [vmem:[%s272 + $0xc8] sm:$0xff]
    %v304 = vld [vmem:[%s272 + $0xd0] sm:$0xff]
    %v305 = vld [vmem:[%s272 + $0xd8] sm:$0xf]
    %v306 = vld [vmem:[%s272 + $0xdc] sm:$0xff]
    %v307 = vld [vmem:[%s272 + $0xe4] sm:$0xff]
    %v308 = vld [vmem:[%s272 + $0xec] sm:$0xf]
    %v309 = vld [vmem:[%s272 + $0xf0] sm:$0xff]
    %v310 = vld [vmem:[%s272 + $0xf8] sm:$0xff]
    %v311 = vld [vmem:[%s272 + $0x100] sm:$0xf]
    %v312 = vld [vmem:[%s272 + $0x104] sm:$0xff]
    %v313 = vld [vmem:[%s272 + $0x10c] sm:$0xff]
    %v314 = vld [vmem:[%s272 + $0x114] sm:$0xf]
    %v315 = vld [vmem:[%s272 + $0x118] sm:$0xff]
    %v316 = vld [vmem:[%s272 + $0x120] sm:$0xff]
    %v317 = vld [vmem:[%s272 + $0x128] sm:$0xf]
    %v318 = vld [vmem:[%s272 + $0x12c] sm:$0xff]
    %v319 = vld [vmem:[%s272 + $0x134] sm:$0xff]
    %v320 = vld [vmem:[%s272 + $0x13c] sm:$0xf]
    %v321 = vpack.c.bf16 %v213, %v213
    %v370 = vunpack.c.l.b16 %v273
    %v371 = vunpack.c.h.b16 %v273
    %v372 = vunpack.c.l.b16 %v274
    %v373 = vunpack.c.h.b16 %v274
    %v374 = vunpack.c.l.b16 %v275
    %v375 = vunpack.c.l.b16 %v276
    %v376 = vunpack.c.h.b16 %v276
    %v377 = vunpack.c.l.b16 %v277
    %v378 = vunpack.c.h.b16 %v277
    %v379 = vunpack.c.l.b16 %v278
    %v380 = vunpack.c.l.b16 %v279
    %v381 = vunpack.c.h.b16 %v279
    %v382 = vunpack.c.l.b16 %v280
    %v383 = vunpack.c.h.b16 %v280
    %v384 = vunpack.c.l.b16 %v281
    %v385 = vunpack.c.l.b16 %v282
    %v386 = vunpack.c.h.b16 %v282
    %v387 = vunpack.c.l.b16 %v283
    %v388 = vunpack.c.h.b16 %v283
    %v389 = vunpack.c.l.b16 %v284
    %v390 = vunpack.c.l.b16 %v285
    %v391 = vunpack.c.h.b16 %v285
    %v392 = vunpack.c.l.b16 %v286
    %v393 = vunpack.c.h.b16 %v286
    %v394 = vunpack.c.l.b16 %v287
    %v395 = vunpack.c.l.b16 %v288
    %v396 = vunpack.c.h.b16 %v288
    %v397 = vunpack.c.l.b16 %v289
    %v398 = vunpack.c.h.b16 %v289
    %v399 = vunpack.c.l.b16 %v290
    %v400 = vunpack.c.l.b16 %v291
    %v401 = vunpack.c.h.b16 %v291
    %v402 = vunpack.c.l.b16 %v292
    %v403 = vunpack.c.h.b16 %v292
    %v404 = vunpack.c.l.b16 %v293
    %v405 = vunpack.c.l.b16 %v294
    %v406 = vunpack.c.h.b16 %v294
    %v407 = vunpack.c.l.b16 %v295
    %v408 = vunpack.c.h.b16 %v295
    %v409 = vunpack.c.l.b16 %v296
    %v410 = vunpack.c.l.b16 %v297
    %v411 = vunpack.c.h.b16 %v297
    %v412 = vunpack.c.l.b16 %v298
    %v413 = vunpack.c.h.b16 %v298
    %v414 = vunpack.c.l.b16 %v299
    %v415 = vunpack.c.l.b16 %v300
    %v416 = vunpack.c.h.b16 %v300
    %v417 = vunpack.c.l.b16 %v301
    %v418 = vunpack.c.h.b16 %v301
    %v419 = vunpack.c.l.b16 %v302
    %v420 = vunpack.c.l.b16 %v303
    %v421 = vunpack.c.h.b16 %v303
    %v422 = vunpack.c.l.b16 %v304
    %v423 = vunpack.c.h.b16 %v304
    %v424 = vunpack.c.l.b16 %v305
    %v425 = vunpack.c.l.b16 %v306
    %v426 = vunpack.c.h.b16 %v306
    %v427 = vunpack.c.l.b16 %v307
    %v428 = vunpack.c.h.b16 %v307
    %v429 = vunpack.c.l.b16 %v308
    %v430 = vunpack.c.l.b16 %v309
    %v431 = vunpack.c.h.b16 %v309
    %v432 = vunpack.c.l.b16 %v310
    %v433 = vunpack.c.h.b16 %v310
    %v434 = vunpack.c.l.b16 %v311
    %v435 = vunpack.c.l.b16 %v312
    %v436 = vunpack.c.h.b16 %v312
    %v437 = vunpack.c.l.b16 %v313
    %v438 = vunpack.c.h.b16 %v313
    %v439 = vunpack.c.l.b16 %v314
    %v440 = vunpack.c.l.b16 %v315
    %v441 = vunpack.c.h.b16 %v315
    %v442 = vunpack.c.l.b16 %v316
    %v443 = vunpack.c.h.b16 %v316
    %v444 = vunpack.c.l.b16 %v317
    %v445 = vunpack.c.l.b16 %v318
    %v446 = vunpack.c.h.b16 %v318
    %v447 = vunpack.c.l.b16 %v319
    %v448 = vunpack.c.h.b16 %v319
    %v449 = vunpack.c.l.b16 %v320
    %v450 = vpack.c.b16 %v375, %v370
    %v451 = vpack.c.b16 %v376, %v371
    %v452 = vpack.c.b16 %v377, %v372
    %v453 = vpack.c.b16 %v378, %v373
    %v454 = vpack.c.b16 %v379, %v374
    %v455 = vpack.c.b16 %v385, %v380
    %v456 = vpack.c.b16 %v386, %v381
    %v457 = vpack.c.b16 %v387, %v382
    %v458 = vpack.c.b16 %v388, %v383
    %v459 = vpack.c.b16 %v389, %v384
    %v460 = vpack.c.b16 %v395, %v390
    %v461 = vpack.c.b16 %v396, %v391
    %v462 = vpack.c.b16 %v397, %v392
    %v463 = vpack.c.b16 %v398, %v393
    %v464 = vpack.c.b16 %v399, %v394
    %v465 = vpack.c.b16 %v405, %v400
    %v466 = vpack.c.b16 %v406, %v401
    %v467 = vpack.c.b16 %v407, %v402
    %v468 = vpack.c.b16 %v408, %v403
    %v469 = vpack.c.b16 %v409, %v404
    %v470 = vpack.c.b16 %v415, %v410
    %v471 = vpack.c.b16 %v416, %v411
    %v472 = vpack.c.b16 %v417, %v412
    %v473 = vpack.c.b16 %v418, %v413
    %v474 = vpack.c.b16 %v419, %v414
    %v475 = vpack.c.b16 %v425, %v420
    %v476 = vpack.c.b16 %v426, %v421
    %v477 = vpack.c.b16 %v427, %v422
    %v478 = vpack.c.b16 %v428, %v423
    %v479 = vpack.c.b16 %v429, %v424
    %v480 = vpack.c.b16 %v435, %v430
    %v481 = vpack.c.b16 %v436, %v431
    %v482 = vpack.c.b16 %v437, %v432
    %v483 = vpack.c.b16 %v438, %v433
    %v484 = vpack.c.b16 %v439, %v434
    %v485 = vpack.c.b16 %v445, %v440
    %v486 = vpack.c.b16 %v446, %v441
    %v487 = vpack.c.b16 %v447, %v442
    %v488 = vpack.c.b16 %v448, %v443
    %v489 = vpack.c.b16 %v449, %v444
    %530 = vmatpush.bf16.msra.mxu0 %v485
    %531 = vmatpush.bf16.msra.mxu0 %v480
    %532 = vmatpush.bf16.msra.mxu0 %v475
    %533 = vmatpush.bf16.msra.mxu0 %v470
    %534 = vmatpush.bf16.msra.mxu0 %v465
    %535 = vmatpush.bf16.msra.mxu0 %v460
    %536 = vmatpush.bf16.msra.mxu0 %v455
    %537 = vmatpush.bf16.msra.mxu0 %v450
    %538 = vmatmul.bf16.gmra.mxu0 %v321
    %v539 = vpop.f32.mrf.mxu0
    %v540 = vadd.f32 0.0, %v539
    %v541 = vpop.f32.mrf.mxu0
    %542 = vdwg.mxu0
    %543 = vmatpush.bf16.msra.mxu0 %v486
    %544 = vmatpush.bf16.msra.mxu0 %v481
    %545 = vmatpush.bf16.msra.mxu0 %v476
    %546 = vmatpush.bf16.msra.mxu0 %v471
    %547 = vmatpush.bf16.msra.mxu0 %v466
    %548 = vmatpush.bf16.msra.mxu0 %v461
    %549 = vmatpush.bf16.msra.mxu0 %v456
    %550 = vmatpush.bf16.msra.mxu0 %v451
    %551 = vmatmul.bf16.gmra.mxu0 %v321
    %v552 = vpop.f32.mrf.mxu0
    %v553 = vadd.f32 0.0, %v552
    %v554 = vpop.f32.mrf.mxu0
    %555 = vdwg.mxu0
    %556 = vmatpush.bf16.msra.mxu0 %v487
    %557 = vmatpush.bf16.msra.mxu0 %v482
    %558 = vmatpush.bf16.msra.mxu0 %v477
    %559 = vmatpush.bf16.msra.mxu0 %v472
    %560 = vmatpush.bf16.msra.mxu0 %v467
    %561 = vmatpush.bf16.msra.mxu0 %v462
    %562 = vmatpush.bf16.msra.mxu0 %v457
    %563 = vmatpush.bf16.msra.mxu0 %v452
    %564 = vmatmul.bf16.gmra.mxu0 %v321
    %v565 = vpop.f32.mrf.mxu0
    %v566 = vadd.f32 0.0, %v565
    %v567 = vpop.f32.mrf.mxu0
    %568 = vdwg.mxu0
    %569 = vmatpush.bf16.msra.mxu0 %v488
    %570 = vmatpush.bf16.msra.mxu0 %v483
    %571 = vmatpush.bf16.msra.mxu0 %v478
    %572 = vmatpush.bf16.msra.mxu0 %v473
    %573 = vmatpush.bf16.msra.mxu0 %v468
    %574 = vmatpush.bf16.msra.mxu0 %v463
    %575 = vmatpush.bf16.msra.mxu0 %v458
    %576 = vmatpush.bf16.msra.mxu0 %v453
    %577 = vmatmul.bf16.gmra.mxu0 %v321
    %v578 = vpop.f32.mrf.mxu0
    %v579 = vadd.f32 0.0, %v578
    %v580 = vpop.f32.mrf.mxu0
    %581 = vdwg.mxu0
    %582 = vmatpush.bf16.msra.mxu0 %v489
    %583 = vmatpush.bf16.msra.mxu0 %v484
    %584 = vmatpush.bf16.msra.mxu0 %v479
    %585 = vmatpush.bf16.msra.mxu0 %v474
    %586 = vmatpush.bf16.msra.mxu0 %v469
    %587 = vmatpush.bf16.msra.mxu0 %v464
    %588 = vmatpush.bf16.msra.mxu0 %v459
    %589 = vmatpush.bf16.msra.mxu0 %v454
    %590 = vmatmul.bf16.gmra.mxu0 %v321
    %v591 = vpop.f32.mrf.mxu0
    %v592 = vadd.f32 0.0, %v591
    %v593 = vpop.f32.mrf.mxu0
    %594 = vdwg.mxu0
    %v643 = vunpack.c.l.b16 %v223
    %v644 = vunpack.c.h.b16 %v223
    %v645 = vunpack.c.l.b16 %v224
    %v646 = vunpack.c.h.b16 %v224
    %v647 = vunpack.c.l.b16 %v225
    %v648 = vunpack.c.l.b16 %v226
    %v649 = vunpack.c.h.b16 %v226
    %v650 = vunpack.c.l.b16 %v227
    %v651 = vunpack.c.h.b16 %v227
    %v652 = vunpack.c.l.b16 %v228
    %v653 = vunpack.c.l.b16 %v229
    %v654 = vunpack.c.h.b16 %v229
    %v655 = vunpack.c.l.b16 %v230
    %v656 = vunpack.c.h.b16 %v230
    %v657 = vunpack.c.l.b16 %v231
    %v658 = vunpack.c.l.b16 %v232
    %v659 = vunpack.c.h.b16 %v232
    %v660 = vunpack.c.l.b16 %v233
    %v661 = vunpack.c.h.b16 %v233
    %v662 = vunpack.c.l.b16 %v234
    %v663 = vunpack.c.l.b16 %v235
    %v664 = vunpack.c.h.b16 %v235
    %v665 = vunpack.c.l.b16 %v236
    %v666 = vunpack.c.h.b16 %v236
    %v667 = vunpack.c.l.b16 %v237
    %v668 = vunpack.c.l.b16 %v238
    %v669 = vunpack.c.h.b16 %v238
    %v670 = vunpack.c.l.b16 %v239
    %v671 = vunpack.c.h.b16 %v239
    %v672 = vunpack.c.l.b16 %v240
    %v673 = vunpack.c.l.b16 %v241
    %v674 = vunpack.c.h.b16 %v241
    %v675 = vunpack.c.l.b16 %v242
    %v676 = vunpack.c.h.b16 %v242
    %v677 = vunpack.c.l.b16 %v243
    %v678 = vunpack.c.l.b16 %v244
    %v679 = vunpack.c.h.b16 %v244
    %v680 = vunpack.c.l.b16 %v245
    %v681 = vunpack.c.h.b16 %v245
    %v682 = vunpack.c.l.b16 %v246
    %v683 = vunpack.c.l.b16 %v247
    %v684 = vunpack.c.h.b16 %v247
    %v685 = vunpack.c.l.b16 %v248
    %v686 = vunpack.c.h.b16 %v248
    %v687 = vunpack.c.l.b16 %v249
    %v688 = vunpack.c.l.b16 %v250
    %v689 = vunpack.c.h.b16 %v250
    %v690 = vunpack.c.l.b16 %v251
    %v691 = vunpack.c.h.b16 %v251
    %v692 = vunpack.c.l.b16 %v252
    %v693 = vunpack.c.l.b16 %v253
    %v694 = vunpack.c.h.b16 %v253
    %v695 = vunpack.c.l.b16 %v254
    %v696 = vunpack.c.h.b16 %v254
    %v697 = vunpack.c.l.b16 %v255
    %v698 = vunpack.c.l.b16 %v256
    %v699 = vunpack.c.h.b16 %v256
    %v700 = vunpack.c.l.b16 %v257
    %v701 = vunpack.c.h.b16 %v257
    %v702 = vunpack.c.l.b16 %v258
    %v703 = vunpack.c.l.b16 %v259
    %v704 = vunpack.c.h.b16 %v259
    %v705 = vunpack.c.l.b16 %v260
    %v706 = vunpack.c.h.b16 %v260
    %v707 = vunpack.c.l.b16 %v261
    %v708 = vunpack.c.l.b16 %v262
    %v709 = vunpack.c.h.b16 %v262
    %v710 = vunpack.c.l.b16 %v263
    %v711 = vunpack.c.h.b16 %v263
    %v712 = vunpack.c.l.b16 %v264
    %v713 = vunpack.c.l.b16 %v265
    %v714 = vunpack.c.h.b16 %v265
    %v715 = vunpack.c.l.b16 %v266
    %v716 = vunpack.c.h.b16 %v266
    %v717 = vunpack.c.l.b16 %v267
    %v718 = vunpack.c.l.b16 %v268
    %v719 = vunpack.c.h.b16 %v268
    %v720 = vunpack.c.l.b16 %v269
    %v721 = vunpack.c.h.b16 %v269
    %v722 = vunpack.c.l.b16 %v270
    %v723 = vpack.c.b16 %v648, %v643
    %v724 = vpack.c.b16 %v649, %v644
    %v725 = vpack.c.b16 %v650, %v645
    %v726 = vpack.c.b16 %v651, %v646
    %v727 = vpack.c.b16 %v652, %v647
    %v728 = vpack.c.b16 %v658, %v653
    %v729 = vpack.c.b16 %v659, %v654
    %v730 = vpack.c.b16 %v660, %v655
    %v731 = vpack.c.b16 %v661, %v656
    %v732 = vpack.c.b16 %v662, %v657
    %v733 = vpack.c.b16 %v668, %v663
    %v734 = vpack.c.b16 %v669, %v664
    %v735 = vpack.c.b16 %v670, %v665
    %v736 = vpack.c.b16 %v671, %v666
    %v737 = vpack.c.b16 %v672, %v667
    %v738 = vpack.c.b16 %v678, %v673
    %v739 = vpack.c.b16 %v679, %v674
    %v740 = vpack.c.b16 %v680, %v675
    %v741 = vpack.c.b16 %v681, %v676
    %v742 = vpack.c.b16 %v682, %v677
    %v743 = vpack.c.b16 %v688, %v683
    %v744 = vpack.c.b16 %v689, %v684
    %v745 = vpack.c.b16 %v690, %v685
    %v746 = vpack.c.b16 %v691, %v686
    %v747 = vpack.c.b16 %v692, %v687
    %v748 = vpack.c.b16 %v698, %v693
    %v749 = vpack.c.b16 %v699, %v694
    %v750 = vpack.c.b16 %v700, %v695
    %v751 = vpack.c.b16 %v701, %v696
    %v752 = vpack.c.b16 %v702, %v697
    %v753 = vpack.c.b16 %v708, %v703
    %v754 = vpack.c.b16 %v709, %v704
    %v755 = vpack.c.b16 %v710, %v705
    %v756 = vpack.c.b16 %v711, %v706
    %v757 = vpack.c.b16 %v712, %v707
    %v758 = vpack.c.b16 %v718, %v713
    %v759 = vpack.c.b16 %v719, %v714
    %v760 = vpack.c.b16 %v720, %v715
    %v761 = vpack.c.b16 %v721, %v716
    %v762 = vpack.c.b16 %v722, %v717
    %803 = vmatpush.bf16.msra.mxu0 %v758
    %804 = vmatpush.bf16.msra.mxu0 %v753
    %805 = vmatpush.bf16.msra.mxu0 %v748
    %806 = vmatpush.bf16.msra.mxu0 %v743
    %807 = vmatpush.bf16.msra.mxu0 %v738
    %808 = vmatpush.bf16.msra.mxu0 %v733
    %809 = vmatpush.bf16.msra.mxu0 %v728
    %810 = vmatpush.bf16.msra.mxu0 %v723
    %811 = vmatmul.bf16.gmra.mxu0 %v271
    %v812 = vpop.f32.mrf.mxu0
    %v813 = vadd.f32 %v540, %v812
    %v814 = vpop.f32.mrf.mxu0
    %815 = vdwg.mxu0
    %816 = vmatpush.bf16.msra.mxu0 %v759
    %817 = vmatpush.bf16.msra.mxu0 %v754
    %818 = vmatpush.bf16.msra.mxu0 %v749
    %819 = vmatpush.bf16.msra.mxu0 %v744
    %820 = vmatpush.bf16.msra.mxu0 %v739
    %821 = vmatpush.bf16.msra.mxu0 %v734
    %822 = vmatpush.bf16.msra.mxu0 %v729
    %823 = vmatpush.bf16.msra.mxu0 %v724
    %824 = vmatmul.bf16.gmra.mxu0 %v271
    %v825 = vpop.f32.mrf.mxu0
    %v826 = vadd.f32 %v553, %v825
    %v827 = vpop.f32.mrf.mxu0
    %828 = vdwg.mxu0
    %829 = vmatpush.bf16.msra.mxu0 %v760
    %830 = vmatpush.bf16.msra.mxu0 %v755
    %831 = vmatpush.bf16.msra.mxu0 %v750
    %832 = vmatpush.bf16.msra.mxu0 %v745
    %833 = vmatpush.bf16.msra.mxu0 %v740
    %834 = vmatpush.bf16.msra.mxu0 %v735
    %835 = vmatpush.bf16.msra.mxu0 %v730
    %836 = vmatpush.bf16.msra.mxu0 %v725
    %837 = vmatmul.bf16.gmra.mxu0 %v271
    %v838 = vpop.f32.mrf.mxu0
    %v839 = vadd.f32 %v566, %v838
    %v840 = vpop.f32.mrf.mxu0
    %841 = vdwg.mxu0
    %842 = vmatpush.bf16.msra.mxu0 %v761
    %843 = vmatpush.bf16.msra.mxu0 %v756
    %844 = vmatpush.bf16.msra.mxu0 %v751
    %845 = vmatpush.bf16.msra.mxu0 %v746
    %846 = vmatpush.bf16.msra.mxu0 %v741
    %847 = vmatpush.bf16.msra.mxu0 %v736
    %848 = vmatpush.bf16.msra.mxu0 %v731
    %849 = vmatpush.bf16.msra.mxu0 %v726
    %850 = vmatmul.bf16.gmra.mxu0 %v271
    %v851 = vpop.f32.mrf.mxu0
    %v852 = vadd.f32 %v579, %v851
    %v853 = vpop.f32.mrf.mxu0
    %854 = vdwg.mxu0
    %855 = vmatpush.bf16.msra.mxu0 %v762
    %856 = vmatpush.bf16.msra.mxu0 %v757
    %857 = vmatpush.bf16.msra.mxu0 %v752
    %858 = vmatpush.bf16.msra.mxu0 %v747
    %859 = vmatpush.bf16.msra.mxu0 %v742
    %860 = vmatpush.bf16.msra.mxu0 %v737
    %861 = vmatpush.bf16.msra.mxu0 %v732
    %862 = vmatpush.bf16.msra.mxu0 %v727
    %863 = vmatmul.bf16.gmra.mxu0 %v271
    %v864 = vpop.f32.mrf.mxu0
    %v865 = vadd.f32 %v592, %v864
    %v866 = vpop.f32.mrf.mxu0
    %867 = vdwg.mxu0
    %s868 = scalar_lea.vmem [#allocation13], 640
    %v869 = vld [vmem:[%s868] sm:$0xff]
    %v870 = vld [vmem:[%s868 + $0x8] sm:$0xff]
    %v871 = vld [vmem:[%s868 + $0x10] sm:$0xf]
    %v872 = vld [vmem:[%s868 + $0x14] sm:$0xff]
    %v873 = vld [vmem:[%s868 + $0x1c] sm:$0xff]
    %v874 = vld [vmem:[%s868 + $0x24] sm:$0xf]
    %v875 = vld [vmem:[%s868 + $0x28] sm:$0xff]
    %v876 = vld [vmem:[%s868 + $0x30] sm:$0xff]
    %v877 = vld [vmem:[%s868 + $0x38] sm:$0xf]
    %v878 = vld [vmem:[%s868 + $0x3c] sm:$0xff]
    %v879 = vld [vmem:[%s868 + $0x44] sm:$0xff]
    %v880 = vld [vmem:[%s868 + $0x4c] sm:$0xf]
    %v881 = vld [vmem:[%s868 + $0x50] sm:$0xff]
    %v882 = vld [vmem:[%s868 + $0x58] sm:$0xff]
    %v883 = vld [vmem:[%s868 + $0x60] sm:$0xf]
    %v884 = vld [vmem:[%s868 + $0x64] sm:$0xff]
    %v885 = vld [vmem:[%s868 + $0x6c] sm:$0xff]
    %v886 = vld [vmem:[%s868 + $0x74] sm:$0xf]
    %v887 = vld [vmem:[%s868 + $0x78] sm:$0xff]
    %v888 = vld [vmem:[%s868 + $0x80] sm:$0xff]
    %v889 = vld [vmem:[%s868 + $0x88] sm:$0xf]
    %v890 = vld [vmem:[%s868 + $0x8c] sm:$0xff]
    %v891 = vld [vmem:[%s868 + $0x94] sm:$0xff]
    %v892 = vld [vmem:[%s868 + $0x9c] sm:$0xf]
    %v893 = vld [vmem:[%s868 + $0xa0] sm:$0xff]
    %v894 = vld [vmem:[%s868 + $0xa8] sm:$0xff]
    %v895 = vld [vmem:[%s868 + $0xb0] sm:$0xf]
    %v896 = vld [vmem:[%s868 + $0xb4] sm:$0xff]
    %v897 = vld [vmem:[%s868 + $0xbc] sm:$0xff]
    %v898 = vld [vmem:[%s868 + $0xc4] sm:$0xf]
    %v899 = vld [vmem:[%s868 + $0xc8] sm:$0xff]
    %v900 = vld [vmem:[%s868 + $0xd0] sm:$0xff]
    %v901 = vld [vmem:[%s868 + $0xd8] sm:$0xf]
    %v902 = vld [vmem:[%s868 + $0xdc] sm:$0xff]
    %v903 = vld [vmem:[%s868 + $0xe4] sm:$0xff]
    %v904 = vld [vmem:[%s868 + $0xec] sm:$0xf]
    %v905 = vld [vmem:[%s868 + $0xf0] sm:$0xff]
    %v906 = vld [vmem:[%s868 + $0xf8] sm:$0xff]
    %v907 = vld [vmem:[%s868 + $0x100] sm:$0xf]
    %v908 = vld [vmem:[%s868 + $0x104] sm:$0xff]
    %v909 = vld [vmem:[%s868 + $0x10c] sm:$0xff]
    %v910 = vld [vmem:[%s868 + $0x114] sm:$0xf]
    %v911 = vld [vmem:[%s868 + $0x118] sm:$0xff]
    %v912 = vld [vmem:[%s868 + $0x120] sm:$0xff]
    %v913 = vld [vmem:[%s868 + $0x128] sm:$0xf]
    %v914 = vld [vmem:[%s868 + $0x12c] sm:$0xff]
    %v915 = vld [vmem:[%s868 + $0x134] sm:$0xff]
    %v916 = vld [vmem:[%s868 + $0x13c] sm:$0xf]
    %v917 = vpack.c.bf16 %v214, %v214
    %v966 = vunpack.c.l.b16 %v869
    %v967 = vunpack.c.h.b16 %v869
    %v968 = vunpack.c.l.b16 %v870
    %v969 = vunpack.c.h.b16 %v870
    %v970 = vunpack.c.l.b16 %v871
    %v971 = vunpack.c.l.b16 %v872
    %v972 = vunpack.c.h.b16 %v872
    %v973 = vunpack.c.l.b16 %v873
    %v974 = vunpack.c.h.b16 %v873
    %v975 = vunpack.c.l.b16 %v874
    %v976 = vunpack.c.l.b16 %v875
    %v977 = vunpack.c.h.b16 %v875
    %v978 = vunpack.c.l.b16 %v876
    %v979 = vunpack.c.h.b16 %v876
    %v980 = vunpack.c.l.b16 %v877
    %v981 = vunpack.c.l.b16 %v878
    %v982 = vunpack.c.h.b16 %v878
    %v983 = vunpack.c.l.b16 %v879
    %v984 = vunpack.c.h.b16 %v879
    %v985 = vunpack.c.l.b16 %v880
    %v986 = vunpack.c.l.b16 %v881
    %v987 = vunpack.c.h.b16 %v881
    %v988 = vunpack.c.l.b16 %v882
    %v989 = vunpack.c.h.b16 %v882
    %v990 = vunpack.c.l.b16 %v883
    %v991 = vunpack.c.l.b16 %v884
    %v992 = vunpack.c.h.b16 %v884
    %v993 = vunpack.c.l.b16 %v885
    %v994 = vunpack.c.h.b16 %v885
    %v995 = vunpack.c.l.b16 %v886
    %v996 = vunpack.c.l.b16 %v887
    %v997 = vunpack.c.h.b16 %v887
    %v998 = vunpack.c.l.b16 %v888
    %v999 = vunpack.c.h.b16 %v888
    %v1000 = vunpack.c.l.b16 %v889
    %v1001 = vunpack.c.l.b16 %v890
    %v1002 = vunpack.c.h.b16 %v890
    %v1003 = vunpack.c.l.b16 %v891
    %v1004 = vunpack.c.h.b16 %v891
    %v1005 = vunpack.c.l.b16 %v892
    %v1006 = vunpack.c.l.b16 %v893
    %v1007 = vunpack.c.h.b16 %v893
    %v1008 = vunpack.c.l.b16 %v894
    %v1009 = vunpack.c.h.b16 %v894
    %v1010 = vunpack.c.l.b16 %v895
    %v1011 = vunpack.c.l.b16 %v896
    %v1012 = vunpack.c.h.b16 %v896
    %v1013 = vunpack.c.l.b16 %v897
    %v1014 = vunpack.c.h.b16 %v897
    %v1015 = vunpack.c.l.b16 %v898
    %v1016 = vunpack.c.l.b16 %v899
    %v1017 = vunpack.c.h.b16 %v899
    %v1018 = vunpack.c.l.b16 %v900
    %v1019 = vunpack.c.h.b16 %v900
    %v1020 = vunpack.c.l.b16 %v901
    %v1021 = vunpack.c.l.b16 %v902
    %v1022 = vunpack.c.h.b16 %v902
    %v1023 = vunpack.c.l.b16 %v903
    %v1024 = vunpack.c.h.b16 %v903
    %v1025 = vunpack.c.l.b16 %v904
    %v1026 = vunpack.c.l.b16 %v905
    %v1027 = vunpack.c.h.b16 %v905
    %v1028 = vunpack.c.l.b16 %v906
    %v1029 = vunpack.c.h.b16 %v906
    %v1030 = vunpack.c.l.b16 %v907
    %v1031 = vunpack.c.l.b16 %v908
    %v1032 = vunpack.c.h.b16 %v908
    %v1033 = vunpack.c.l.b16 %v909
    %v1034 = vunpack.c.h.b16 %v909
    %v1035 = vunpack.c.l.b16 %v910
    %v1036 = vunpack.c.l.b16 %v911
    %v1037 = vunpack.c.h.b16 %v911
    %v1038 = vunpack.c.l.b16 %v912
    %v1039 = vunpack.c.h.b16 %v912
    %v1040 = vunpack.c.l.b16 %v913
    %v1041 = vunpack.c.l.b16 %v914
    %v1042 = vunpack.c.h.b16 %v914
    %v1043 = vunpack.c.l.b16 %v915
    %v1044 = vunpack.c.h.b16 %v915
    %v1045 = vunpack.c.l.b16 %v916
    %v1046 = vpack.c.b16 %v971, %v966
    %v1047 = vpack.c.b16 %v972, %v967
    %v1048 = vpack.c.b16 %v973, %v968
    %v1049 = vpack.c.b16 %v974, %v969
    %v1050 = vpack.c.b16 %v975, %v970
    %v1051 = vpack.c.b16 %v981, %v976
    %v1052 = vpack.c.b16 %v982, %v977
    %v1053 = vpack.c.b16 %v983, %v978
    %v1054 = vpack.c.b16 %v984, %v979
    %v1055 = vpack.c.b16 %v985, %v980
    %v1056 = vpack.c.b16 %v991, %v986
    %v1057 = vpack.c.b16 %v992, %v987
    %v1058 = vpack.c.b16 %v993, %v988
    %v1059 = vpack.c.b16 %v994, %v989
    %v1060 = vpack.c.b16 %v995, %v990
    %v1061 = vpack.c.b16 %v1001, %v996
    %v1062 = vpack.c.b16 %v1002, %v997
    %v1063 = vpack.c.b16 %v1003, %v998
    %v1064 = vpack.c.b16 %v1004, %v999
    %v1065 = vpack.c.b16 %v1005, %v1000
    %v1066 = vpack.c.b16 %v1011, %v1006
    %v1067 = vpack.c.b16 %v1012, %v1007
    %v1068 = vpack.c.b16 %v1013, %v1008
    %v1069 = vpack.c.b16 %v1014, %v1009
    %v1070 = vpack.c.b16 %v1015, %v1010
    %v1071 = vpack.c.b16 %v1021, %v1016
    %v1072 = vpack.c.b16 %v1022, %v1017
    %v1073 = vpack.c.b16 %v1023, %v1018
    %v1074 = vpack.c.b16 %v1024, %v1019
    %v1075 = vpack.c.b16 %v1025, %v1020
    %v1076 = vpack.c.b16 %v1031, %v1026
    %v1077 = vpack.c.b16 %v1032, %v1027
    %v1078 = vpack.c.b16 %v1033, %v1028
    %v1079 = vpack.c.b16 %v1034, %v1029
    %v1080 = vpack.c.b16 %v1035, %v1030
    %v1081 = vpack.c.b16 %v1041, %v1036
    %v1082 = vpack.c.b16 %v1042, %v1037
    %v1083 = vpack.c.b16 %v1043, %v1038
    %v1084 = vpack.c.b16 %v1044, %v1039
    %v1085 = vpack.c.b16 %v1045, %v1040
    %1126 = vmatpush.bf16.msra.mxu0 %v1081
    %1127 = vmatpush.bf16.msra.mxu0 %v1076
    %1128 = vmatpush.bf16.msra.mxu0 %v1071
    %1129 = vmatpush.bf16.msra.mxu0 %v1066
    %1130 = vmatpush.bf16.msra.mxu0 %v1061
    %1131 = vmatpush.bf16.msra.mxu0 %v1056
    %1132 = vmatpush.bf16.msra.mxu0 %v1051
    %1133 = vmatpush.bf16.msra.mxu0 %v1046
    %1134 = vmatmul.bf16.gmra.mxu0 %v917
    %v1135 = vpop.f32.mrf.mxu0
    %v1136 = vadd.f32 0.0, %v1135
    %v1137 = vpop.f32.mrf.mxu0
    %1138 = vdwg.mxu0
    %1139 = vmatpush.bf16.msra.mxu0 %v1082
    %1140 = vmatpush.bf16.msra.mxu0 %v1077
    %1141 = vmatpush.bf16.msra.mxu0 %v1072
    %1142 = vmatpush.bf16.msra.mxu0 %v1067
    %1143 = vmatpush.bf16.msra.mxu0 %v1062
    %1144 = vmatpush.bf16.msra.mxu0 %v1057
    %1145 = vmatpush.bf16.msra.mxu0 %v1052
    %1146 = vmatpush.bf16.msra.mxu0 %v1047
    %1147 = vmatmul.bf16.gmra.mxu0 %v917
    %v1148 = vpop.f32.mrf.mxu0
    %v1149 = vadd.f32 0.0, %v1148
    %v1150 = vpop.f32.mrf.mxu0
    %1151 = vdwg.mxu0
    %1152 = vmatpush.bf16.msra.mxu0 %v1083
    %1153 = vmatpush.bf16.msra.mxu0 %v1078
    %1154 = vmatpush.bf16.msra.mxu0 %v1073
    %1155 = vmatpush.bf16.msra.mxu0 %v1068
    %1156 = vmatpush.bf16.msra.mxu0 %v1063
    %1157 = vmatpush.bf16.msra.mxu0 %v1058
    %1158 = vmatpush.bf16.msra.mxu0 %v1053
    %1159 = vmatpush.bf16.msra.mxu0 %v1048
    %1160 = vmatmul.bf16.gmra.mxu0 %v917
    %v1161 = vpop.f32.mrf.mxu0
    %v1162 = vadd.f32 0.0, %v1161
    %v1163 = vpop.f32.mrf.mxu0
    %1164 = vdwg.mxu0
    %1165 = vmatpush.bf16.msra.mxu0 %v1084
    %1166 = vmatpush.bf16.msra.mxu0 %v1079
    %1167 = vmatpush.bf16.msra.mxu0 %v1074
    %1168 = vmatpush.bf16.msra.mxu0 %v1069
    %1169 = vmatpush.bf16.msra.mxu0 %v1064
    %1170 = vmatpush.bf16.msra.mxu0 %v1059
    %1171 = vmatpush.bf16.msra.mxu0 %v1054
    %1172 = vmatpush.bf16.msra.mxu0 %v1049
    %1173 = vmatmul.bf16.gmra.mxu0 %v917
    %v1174 = vpop.f32.mrf.mxu0
    %v1175 = vadd.f32 0.0, %v1174
    %v1176 = vpop.f32.mrf.mxu0
    %1177 = vdwg.mxu0
    %1178 = vmatpush.bf16.msra.mxu0 %v1085
    %1179 = vmatpush.bf16.msra.mxu0 %v1080
    %1180 = vmatpush.bf16.msra.mxu0 %v1075
    %1181 = vmatpush.bf16.msra.mxu0 %v1070
    %1182 = vmatpush.bf16.msra.mxu0 %v1065
    %1183 = vmatpush.bf16.msra.mxu0 %v1060
    %1184 = vmatpush.bf16.msra.mxu0 %v1055
    %1185 = vmatpush.bf16.msra.mxu0 %v1050
    %1186 = vmatmul.bf16.gmra.mxu0 %v917
    %v1187 = vpop.f32.mrf.mxu0
    %v1188 = vadd.f32 0.0, %v1187
    %v1189 = vpop.f32.mrf.mxu0
    %1190 = vdwg.mxu0
    %v1191 = vadd.f32 %v813, %v1136
    %v1192 = vadd.f32 %v826, %v1149
    %v1193 = vadd.f32 %v839, %v1162
    %v1194 = vadd.f32 %v852, %v1175
    %v1195 = vadd.f32 %v865, %v1188
    %v1197 = vperm.slane %v216, 0
    %v1198 = vperm.slane %v216, 1
    %v1199 = vperm.slane %v216, 2
    %v1200 = vperm.slane %v216, 3
    %v1201 = vperm.slane %v216, 4
    %v1207 = vadd.f32 %v1191, %v1197
    %v1208 = vadd.f32 %v1192, %v1198
    %v1209 = vadd.f32 %v1193, %v1199
    %v1210 = vadd.f32 %v1194, %v1200
    %v1211 = vadd.f32 %v1195, %v1201
    %v1212 = vxor.u32 %v1207, 2147483648
    %v1213 = vmul.f32 %v1212, 1.442695
    %v1214 = vpow.pop %v1213
    %v1215 = vadd.f32 %v1214, 1.0
    %v1216 = vrcp.pop %v1215
    %v1217 = vmul.f32 %v1215, %v1216
    %v1218 = vsub.f32 1.0, %v1217
    %v1219 = vmul.f32 %v1216, %v1218
    %v1220 = vadd.f32 %v1216, %v1219
    %vm1221 = vweird.f32 %v1215
    %vm1222 = vweird.f32 %v1216
    %vm1223 = vmor %vm1221, %vm1222
    %v1224 = vsel %vm1223, %v1216, %v1220
    %v1225 = vand.u32 2147483647, %v1215
    %vm1226 = vcmp.eq.f32.partialorder %v1225, 8.507059e+37
    %v1227 = vand.u32 %v1215, 2147483648
    %v1228 = vor.u32 1.1754944e-38, %v1227
    %v1229 = vsel %vm1226, %v1228, %v1224
    %v1230 = vmul.f32 1.0, %v1229
    %v1231 = vxor.u32 %v1208, 2147483648
    %v1232 = vmul.f32 %v1231, 1.442695
    %v1233 = vpow.pop %v1232
    %v1234 = vadd.f32 %v1233, 1.0
    %v1235 = vrcp.pop %v1234
    %v1236 = vmul.f32 %v1234, %v1235
    %v1237 = vsub.f32 1.0, %v1236
    %v1238 = vmul.f32 %v1235, %v1237
    %v1239 = vadd.f32 %v1235, %v1238
    %vm1240 = vweird.f32 %v1234
    %vm1241 = vweird.f32 %v1235
    %vm1242 = vmor %vm1240, %vm1241
    %v1243 = vsel %vm1242, %v1235, %v1239
    %v1244 = vand.u32 2147483647, %v1234
    %vm1245 = vcmp.eq.f32.partialorder %v1244, 8.507059e+37
    %v1246 = vand.u32 %v1234, 2147483648
    %v1247 = vor.u32 1.1754944e-38, %v1246
    %v1248 = vsel %vm1245, %v1247, %v1243
    %v1249 = vmul.f32 1.0, %v1248
    %v1250 = vxor.u32 %v1209, 2147483648
    %v1251 = vmul.f32 %v1250, 1.442695
    %v1252 = vpow.pop %v1251
    %v1253 = vadd.f32 %v1252, 1.0
    %v1254 = vrcp.pop %v1253
    %v1255 = vmul.f32 %v1253, %v1254
    %v1256 = vsub.f32 1.0, %v1255
    %v1257 = vmul.f32 %v1254, %v1256
    %v1258 = vadd.f32 %v1254, %v1257
    %vm1259 = vweird.f32 %v1253
    %vm1260 = vweird.f32 %v1254
    %vm1261 = vmor %vm1259, %vm1260
    %v1262 = vsel %vm1261, %v1254, %v1258
    %v1263 = vand.u32 2147483647, %v1253
    %vm1264 = vcmp.eq.f32.partialorder %v1263, 8.507059e+37
    %v1265 = vand.u32 %v1253, 2147483648
    %v1266 = vor.u32 1.1754944e-38, %v1265
    %v1267 = vsel %vm1264, %v1266, %v1262
    %v1268 = vmul.f32 1.0, %v1267
    %v1269 = vtanh.pop %v1210
    %v1270 = vmul.f32 %v1249, %v215
    %v1271 = vmul.f32 %v1230, %v1269
    %v1272 = vadd.f32 %v1270, %v1271
    %v1273 = vtanh.pop %v1272
    %v1274 = vmul.f32 %v1268, %v1273
    %v1275 = vxor.u32 %v1211, 2147483648
    %v1276 = vmul.f32 %v1275, 1.442695
    %v1277 = vpow.pop %v1276
    %v1278 = vadd.f32 %v1277, 1.0
    %v1279 = vrcp.pop %v1278
    %v1280 = vmul.f32 %v1278, %v1279
    %v1281 = vsub.f32 1.0, %v1280
    %v1282 = vmul.f32 %v1279, %v1281
    %v1283 = vadd.f32 %v1279, %v1282
    %vm1284 = vweird.f32 %v1278
    %vm1285 = vweird.f32 %v1279
    %vm1286 = vmor %vm1284, %vm1285
    %v1287 = vsel %vm1286, %v1279, %v1283
    %v1288 = vand.u32 2147483647, %v1278
    %vm1289 = vcmp.eq.f32.partialorder %v1288, 8.507059e+37
    %v1290 = vand.u32 %v1278, 2147483648
    %v1291 = vor.u32 1.1754944e-38, %v1290
    %v1292 = vsel %vm1289, %v1291, %v1287
    %v1293 = vmul.f32 1.0, %v1292
    %v1294 = vmul.f32 %v1293, %v1273
    %1295 = vst [vmem:[#allocation21] sm:$0xff] %v1274
    %1296 = vst [vmem:[#allocation23] sm:$0xff] %v1272
    %v1297 = vld [vmem:[#allocation14] sm:$0xf]
    %v1298 = vld [vmem:[#allocation14 + $0x4] sm:$0xf]
    %v1299 = vld [vmem:[#allocation14 + $0x8] sm:$0xf]
    %v1300 = vld [vmem:[#allocation14 + $0xc] sm:$0xf]
    %v1301 = vld [vmem:[#allocation14 + $0x10] sm:$0xf]
    %v1302 = vld [vmem:[#allocation14 + $0x14] sm:$0xf]
    %v1303 = vld [vmem:[#allocation14 + $0x18] sm:$0xf]
    %v1304 = vld [vmem:[#allocation14 + $0x1c] sm:$0xf]
    %v1305 = vld [vmem:[#allocation14 + $0x20] sm:$0xf]
    %v1306 = vld [vmem:[#allocation14 + $0x24] sm:$0xf]
    %v1307 = vld [vmem:[#allocation14 + $0x28] sm:$0xf]
    %v1308 = vld [vmem:[#allocation14 + $0x2c] sm:$0xf]
    %v1309 = vld [vmem:[#allocation14 + $0x30] sm:$0xf]
    %v1310 = vld [vmem:[#allocation14 + $0x34] sm:$0xf]
    %v1311 = vld [vmem:[#allocation14 + $0x38] sm:$0xf]
    %v1312 = vld [vmem:[#allocation14 + $0x3c] sm:$0xf]
    %v1313 = vpack.c.bf16 %v1294, %v1294
    %v1315 = vperm.slane %v217, 0
    %v1333 = vunpack.c.l.b16 %v1297
    %v1334 = vunpack.c.l.b16 %v1298
    %v1335 = vunpack.c.l.b16 %v1299
    %v1336 = vunpack.c.l.b16 %v1300
    %v1337 = vunpack.c.l.b16 %v1301
    %v1338 = vunpack.c.l.b16 %v1302
    %v1339 = vunpack.c.l.b16 %v1303
    %v1340 = vunpack.c.l.b16 %v1304
    %v1341 = vunpack.c.l.b16 %v1305
    %v1342 = vunpack.c.l.b16 %v1306
    %v1343 = vunpack.c.l.b16 %v1307
    %v1344 = vunpack.c.l.b16 %v1308
    %v1345 = vunpack.c.l.b16 %v1309
    %v1346 = vunpack.c.l.b16 %v1310
    %v1347 = vunpack.c.l.b16 %v1311
    %v1348 = vunpack.c.l.b16 %v1312
    %v1349 = vpack.c.b16 %v1334, %v1333
    %v1350 = vpack.c.b16 %v1336, %v1335
    %v1351 = vpack.c.b16 %v1338, %v1337
    %v1352 = vpack.c.b16 %v1340, %v1339
    %v1353 = vpack.c.b16 %v1342, %v1341
    %v1354 = vpack.c.b16 %v1344, %v1343
    %v1355 = vpack.c.b16 %v1346, %v1345
    %v1356 = vpack.c.b16 %v1348, %v1347
    %1365 = vmatpush.bf16.msra.mxu0 %v1356
    %1366 = vmatpush.bf16.msra.mxu0 %v1355
    %1367 = vmatpush.bf16.msra.mxu0 %v1354
    %1368 = vmatpush.bf16.msra.mxu0 %v1353
    %1369 = vmatpush.bf16.msra.mxu0 %v1352
    %1370 = vmatpush.bf16.msra.mxu0 %v1351
    %1371 = vmatpush.bf16.msra.mxu0 %v1350
    %1372 = vmatpush.bf16.msra.mxu0 %v1349
    %1373 = vmatmul.bf16.gmra.mxu0 %v1313
    %v1374 = vpop.f32.mrf.mxu0
    %v1375 = vadd.f32 %v1315, %v1374
    %v1376 = vpop.f32.mrf.mxu0
    %1377 = vdwg.mxu0
    %v1378 = vmax.f32 %v1375, 0.0
    %s1379 = scalar_lea.vmem [#allocation14], 64
    %v1380 = vld [vmem:[%s1379] sm:$0xf]
    %v1381 = vld [vmem:[%s1379 + $0x4] sm:$0xf]
    %v1382 = vld [vmem:[%s1379 + $0x8] sm:$0xf]
    %v1383 = vld [vmem:[%s1379 + $0xc] sm:$0xf]
    %v1384 = vld [vmem:[%s1379 + $0x10] sm:$0xf]
    %v1385 = vld [vmem:[%s1379 + $0x14] sm:$0xf]
    %v1386 = vld [vmem:[%s1379 + $0x18] sm:$0xf]
    %v1387 = vld [vmem:[%s1379 + $0x1c] sm:$0xf]
    %v1388 = vld [vmem:[%s1379 + $0x20] sm:$0xf]
    %v1389 = vld [vmem:[%s1379 + $0x24] sm:$0xf]
    %v1390 = vld [vmem:[%s1379 + $0x28] sm:$0xf]
    %v1391 = vld [vmem:[%s1379 + $0x2c] sm:$0xf]
    %v1392 = vld [vmem:[%s1379 + $0x30] sm:$0xf]
    %v1393 = vld [vmem:[%s1379 + $0x34] sm:$0xf]
    %v1394 = vld [vmem:[%s1379 + $0x38] sm:$0xf]
    %v1395 = vld [vmem:[%s1379 + $0x3c] sm:$0xf]
    %v1396 = vpack.c.bf16 %v1274, %v1274
    %v1398 = vperm.slane %v218, 0
    %v1416 = vunpack.c.l.b16 %v1380
    %v1417 = vunpack.c.l.b16 %v1381
    %v1418 = vunpack.c.l.b16 %v1382
    %v1419 = vunpack.c.l.b16 %v1383
    %v1420 = vunpack.c.l.b16 %v1384
    %v1421 = vunpack.c.l.b16 %v1385
    %v1422 = vunpack.c.l.b16 %v1386
    %v1423 = vunpack.c.l.b16 %v1387
    %v1424 = vunpack.c.l.b16 %v1388
    %v1425 = vunpack.c.l.b16 %v1389
    %v1426 = vunpack.c.l.b16 %v1390
    %v1427 = vunpack.c.l.b16 %v1391
    %v1428 = vunpack.c.l.b16 %v1392
    %v1429 = vunpack.c.l.b16 %v1393
    %v1430 = vunpack.c.l.b16 %v1394
    %v1431 = vunpack.c.l.b16 %v1395
    %v1432 = vpack.c.b16 %v1417, %v1416
    %v1433 = vpack.c.b16 %v1419, %v1418
    %v1434 = vpack.c.b16 %v1421, %v1420
    %v1435 = vpack.c.b16 %v1423, %v1422
    %v1436 = vpack.c.b16 %v1425, %v1424
    %v1437 = vpack.c.b16 %v1427, %v1426
    %v1438 = vpack.c.b16 %v1429, %v1428
    %v1439 = vpack.c.b16 %v1431, %v1430
    %1448 = vmatpush.bf16.msra.mxu0 %v1439
    %1449 = vmatpush.bf16.msra.mxu0 %v1438
    %1450 = vmatpush.bf16.msra.mxu0 %v1437
    %1451 = vmatpush.bf16.msra.mxu0 %v1436
    %1452 = vmatpush.bf16.msra.mxu0 %v1435
    %1453 = vmatpush.bf16.msra.mxu0 %v1434
    %1454 = vmatpush.bf16.msra.mxu0 %v1433
    %1455 = vmatpush.bf16.msra.mxu0 %v1432
    %1456 = vmatmul.bf16.gmra.mxu0 %v1396
    %v1457 = vpop.f32.mrf.mxu0
    %v1458 = vadd.f32 %v1398, %v1457
    %v1459 = vpop.f32.mrf.mxu0
    %1460 = vdwg.mxu0
    %v1461 = vtanh.pop %v1458
    %v1462 = vld [vmem:[#allocation16] sm:$0xf]
    %v1463 = vld [vmem:[#allocation16 + $0x4] sm:$0xf]
    %v1464 = vld [vmem:[#allocation16 + $0x8] sm:$0xf]
    %v1465 = vld [vmem:[#allocation16 + $0xc] sm:$0xf]
    %v1466 = vld [vmem:[#allocation16 + $0x10] sm:$0xf]
    %v1467 = vld [vmem:[#allocation16 + $0x14] sm:$0xf]
    %v1468 = vld [vmem:[#allocation16 + $0x18] sm:$0xf]
    %v1469 = vld [vmem:[#allocation16 + $0x1c] sm:$0xf]
    %v1470 = vld [vmem:[#allocation16 + $0x20] sm:$0xf]
    %v1471 = vld [vmem:[#allocation16 + $0x24] sm:$0xf]
    %v1472 = vld [vmem:[#allocation16 + $0x28] sm:$0xf]
    %v1473 = vld [vmem:[#allocation16 + $0x2c] sm:$0xf]
    %v1474 = vld [vmem:[#allocation16 + $0x30] sm:$0xf]
    %v1475 = vld [vmem:[#allocation16 + $0x34] sm:$0xf]
    %v1476 = vld [vmem:[#allocation16 + $0x38] sm:$0xf]
    %v1477 = vld [vmem:[#allocation16 + $0x3c] sm:$0xf]
    %v1478 = vpack.c.bf16 %v1378, %v1378
    %v1480 = vperm.slane %v219, 0
    %v1498 = vunpack.c.l.b16 %v1462
    %v1499 = vunpack.c.l.b16 %v1463
    %v1500 = vunpack.c.l.b16 %v1464
    %v1501 = vunpack.c.l.b16 %v1465
    %v1502 = vunpack.c.l.b16 %v1466
    %v1503 = vunpack.c.l.b16 %v1467
    %v1504 = vunpack.c.l.b16 %v1468
    %v1505 = vunpack.c.l.b16 %v1469
    %v1506 = vunpack.c.l.b16 %v1470
    %v1507 = vunpack.c.l.b16 %v1471
    %v1508 = vunpack.c.l.b16 %v1472
    %v1509 = vunpack.c.l.b16 %v1473
    %v1510 = vunpack.c.l.b16 %v1474
    %v1511 = vunpack.c.l.b16 %v1475
    %v1512 = vunpack.c.l.b16 %v1476
    %v1513 = vunpack.c.l.b16 %v1477
    %v1514 = vpack.c.b16 %v1499, %v1498
    %v1515 = vpack.c.b16 %v1501, %v1500
    %v1516 = vpack.c.b16 %v1503, %v1502
    %v1517 = vpack.c.b16 %v1505, %v1504
    %v1518 = vpack.c.b16 %v1507, %v1506
    %v1519 = vpack.c.b16 %v1509, %v1508
    %v1520 = vpack.c.b16 %v1511, %v1510
    %v1521 = vpack.c.b16 %v1513, %v1512
    %1530 = vmatpush.bf16.msra.mxu0 %v1521
    %1531 = vmatpush.bf16.msra.mxu0 %v1520
    %1532 = vmatpush.bf16.msra.mxu0 %v1519
    %1533 = vmatpush.bf16.msra.mxu0 %v1518
    %1534 = vmatpush.bf16.msra.mxu0 %v1517
    %1535 = vmatpush.bf16.msra.mxu0 %v1516
    %1536 = vmatpush.bf16.msra.mxu0 %v1515
    %1537 = vmatpush.bf16.msra.mxu0 %v1514
    %1538 = vmatmul.bf16.gmra.mxu0 %v1478
    %v1539 = vpop.f32.mrf.mxu0
    %v1540 = vadd.f32 %v1480, %v1539
    %v1541 = vpop.f32.mrf.mxu0
    %1542 = vdwg.mxu0
    %s1543 = scalar_lea.vmem [#allocation16], 64
    %v1544 = vld [vmem:[%s1543] sm:$0xf]
    %v1545 = vld [vmem:[%s1543 + $0x4] sm:$0xf]
    %v1546 = vld [vmem:[%s1543 + $0x8] sm:$0xf]
    %v1547 = vld [vmem:[%s1543 + $0xc] sm:$0xf]
    %v1548 = vld [vmem:[%s1543 + $0x10] sm:$0xf]
    %v1549 = vld [vmem:[%s1543 + $0x14] sm:$0xf]
    %v1550 = vld [vmem:[%s1543 + $0x18] sm:$0xf]
    %v1551 = vld [vmem:[%s1543 + $0x1c] sm:$0xf]
    %v1552 = vld [vmem:[%s1543 + $0x20] sm:$0xf]
    %v1553 = vld [vmem:[%s1543 + $0x24] sm:$0xf]
    %v1554 = vld [vmem:[%s1543 + $0x28] sm:$0xf]
    %v1555 = vld [vmem:[%s1543 + $0x2c] sm:$0xf]
    %v1556 = vld [vmem:[%s1543 + $0x30] sm:$0xf]
    %v1557 = vld [vmem:[%s1543 + $0x34] sm:$0xf]
    %v1558 = vld [vmem:[%s1543 + $0x38] sm:$0xf]
    %v1559 = vld [vmem:[%s1543 + $0x3c] sm:$0xf]
    %v1560 = vpack.c.bf16 %v1461, %v1461
    %v1562 = vperm.slane %v220, 0
    %v1580 = vunpack.c.l.b16 %v1544
    %v1581 = vunpack.c.l.b16 %v1545
    %v1582 = vunpack.c.l.b16 %v1546
    %v1583 = vunpack.c.l.b16 %v1547
    %v1584 = vunpack.c.l.b16 %v1548
    %v1585 = vunpack.c.l.b16 %v1549
    %v1586 = vunpack.c.l.b16 %v1550
    %v1587 = vunpack.c.l.b16 %v1551
    %v1588 = vunpack.c.l.b16 %v1552
    %v1589 = vunpack.c.l.b16 %v1553
    %v1590 = vunpack.c.l.b16 %v1554
    %v1591 = vunpack.c.l.b16 %v1555
    %v1592 = vunpack.c.l.b16 %v1556
    %v1593 = vunpack.c.l.b16 %v1557
    %v1594 = vunpack.c.l.b16 %v1558
    %v1595 = vunpack.c.l.b16 %v1559
    %v1596 = vpack.c.b16 %v1581, %v1580
    %v1597 = vpack.c.b16 %v1583, %v1582
    %v1598 = vpack.c.b16 %v1585, %v1584
    %v1599 = vpack.c.b16 %v1587, %v1586
    %v1600 = vpack.c.b16 %v1589, %v1588
    %v1601 = vpack.c.b16 %v1591, %v1590
    %v1602 = vpack.c.b16 %v1593, %v1592
    %v1603 = vpack.c.b16 %v1595, %v1594
    %1612 = vmatpush.bf16.msra.mxu0 %v1603
    %1613 = vmatpush.bf16.msra.mxu0 %v1602
    %1614 = vmatpush.bf16.msra.mxu0 %v1601
    %1615 = vmatpush.bf16.msra.mxu0 %v1600
    %1616 = vmatpush.bf16.msra.mxu0 %v1599
    %1617 = vmatpush.bf16.msra.mxu0 %v1598
    %1618 = vmatpush.bf16.msra.mxu0 %v1597
    %1619 = vmatpush.bf16.msra.mxu0 %v1596
    %1620 = vmatmul.bf16.gmra.mxu0 %v1560
    %v1621 = vpop.f32.mrf.mxu0
    %v1622 = vadd.f32 %v1562, %v1621
    %v1623 = vpop.f32.mrf.mxu0
    %1624 = vdwg.mxu0
    %v1625 = vadd.f32 %v1540, %v1622
    %v1626 = vtanh.pop %v1625
    %v1628 = vperm.slane %v221, 0
    %v1630 = vmul.f32 %v1626, %v1628
    %1631 = vadd.xlane.f32.xlu0 %v1630
    %v1632 = vpop.xlane.xlu0 %1631
    %v1633 = vld [vmem:[#allocation11] sm:$0xf]
    %v1634 = vld [vmem:[#allocation11 + $0x4] sm:$0xf]
    %v1635 = vld [vmem:[#allocation11 + $0x8] sm:$0xf]
    %v1636 = vld [vmem:[#allocation11 + $0xc] sm:$0xf]
    %v1637 = vld [vmem:[#allocation11 + $0x10] sm:$0xf]
    %v1638 = vld [vmem:[#allocation11 + $0x14] sm:$0xf]
    %v1639 = vld [vmem:[#allocation11 + $0x18] sm:$0xf]
    %v1640 = vld [vmem:[#allocation11 + $0x1c] sm:$0xf]
    %v1641 = vunpack.c.l.bf16 %v1633
    %v1642 = vunpack.c.l.bf16 %v1634
    %v1643 = vunpack.c.l.bf16 %v1635
    %v1644 = vunpack.c.l.bf16 %v1636
    %v1645 = vunpack.c.l.bf16 %v1637
    %v1646 = vunpack.c.l.bf16 %v1638
    %v1647 = vunpack.c.l.bf16 %v1639
    %v1648 = vunpack.c.l.bf16 %v1640
    %v1650 = vrot.slane %v1622, 1
    %v1651 = vrot.slane %v1622, 2
    %v1652 = vrot.slane %v1622, 3
    %v1653 = vrot.slane %v1622, 4
    %v1654 = vrot.slane %v1622, 5
    %v1655 = vrot.slane %v1622, 6
    %v1656 = vrot.slane %v1622, 7
    %v1657 = vperm.slane %v1622, 0
    %v1658 = vperm.slane %v1650, 0
    %v1659 = vperm.slane %v1651, 0
    %v1660 = vperm.slane %v1652, 0
    %v1661 = vperm.slane %v1653, 0
    %v1662 = vperm.slane %v1654, 0
    %v1663 = vperm.slane %v1655, 0
    %v1664 = vperm.slane %v1656, 0
    %v1673 = vadd.f32 %v1641, %v1657
    %v1674 = vadd.f32 %v1642, %v1658
    %v1675 = vadd.f32 %v1643, %v1659
    %v1676 = vadd.f32 %v1644, %v1660
    %v1677 = vadd.f32 %v1645, %v1661
    %v1678 = vadd.f32 %v1646, %v1662
    %v1679 = vadd.f32 %v1647, %v1663
    %v1680 = vadd.f32 %v1648, %v1664
    %v1681 = vtanh.pop %v1673
    %v1682 = vtanh.pop %v1674
    %v1683 = vtanh.pop %v1675
    %v1684 = vtanh.pop %v1676
    %v1685 = vtanh.pop %v1677
    %v1686 = vtanh.pop %v1678
    %v1687 = vtanh.pop %v1679
    %v1688 = vtanh.pop %v1680
    %v1689 = vmul.f32 %v1681, %v1628
    %v1690 = vmul.f32 %v1682, %v1628
    %v1691 = vmul.f32 %v1683, %v1628
    %v1692 = vmul.f32 %v1684, %v1628
    %v1693 = vmul.f32 %v1685, %v1628
    %v1694 = vmul.f32 %v1686, %v1628
    %v1695 = vmul.f32 %v1687, %v1628
    %v1696 = vmul.f32 %v1688, %v1628
    %1697 = vadd.xlane.f32.xlu0 %v1689
    %v1698 = vpop.xlane.xlu0 %1697
    %1699 = vadd.xlane.f32.xlu0 %v1690
    %v1700 = vpop.xlane.xlu0 %1699
    %1701 = vadd.xlane.f32.xlu0 %v1691
    %v1702 = vpop.xlane.xlu0 %1701
    %1703 = vadd.xlane.f32.xlu0 %v1692
    %v1704 = vpop.xlane.xlu0 %1703
    %1705 = vadd.xlane.f32.xlu0 %v1693
    %v1706 = vpop.xlane.xlu0 %1705
    %1707 = vadd.xlane.f32.xlu0 %v1694
    %v1708 = vpop.xlane.xlu0 %1707
    %1709 = vadd.xlane.f32.xlu0 %v1695
    %v1710 = vpop.xlane.xlu0 %1709
    %1711 = vadd.xlane.f32.xlu0 %v1696
    %v1712 = vpop.xlane.xlu0 %1711
    %v1721 = vlaneseq
    %v1722 = vand.u32 %v1721, 127
    %v1723 = vperm.slane %v1698, %v1722
    %v1724 = vperm.slane %v1700, %v1722
    %v1725 = vperm.slane %v1702, %v1722
    %v1726 = vperm.slane %v1704, %v1722
    %v1727 = vperm.slane %v1706, %v1722
    %v1728 = vperm.slane %v1708, %v1722
    %v1729 = vperm.slane %v1710, %v1722
    %v1730 = vperm.slane %v1712, %v1722
    %vm1731 = vcmask 1041409
    %v1732 = vsel %vm1731, %v1724, %v1723
    %vm1733 = vcmask 1042434
    %v1734 = vsel %vm1733, %v1725, %v1732
    %vm1735 = vcmask 1043459
    %v1736 = vsel %vm1735, %v1726, %v1734
    %vm1737 = vcmask 1044484
    %v1738 = vsel %vm1737, %v1727, %v1736
    %vm1739 = vcmask 1045509
    %v1740 = vsel %vm1739, %v1728, %v1738
    %vm1741 = vcmask 1046534
    %v1742 = vsel %vm1741, %v1729, %v1740
    %vm1743 = vcmask 1047559
    %v1744 = vsel %vm1743, %v1730, %v1742
    %vm1746 = vcmask 64512
    %v1747 = vsel %vm1746, %v1744, -inf
    %1748 = vmax.xlane.f32.xlu0 %v1747
    %v1749 = vpop.xlane.xlu0 %1748
    %v1750 = vmax.f32 %v1632, %v1749
    %v1751 = vsub.f32 %v1632, %v1750
    %v1752 = vmul.f32 %v1751, 1.442695
    %v1753 = vpow.pop %v1752
    %v1755 = vperm.slane %v1750, 0
    %v1756 = vperm.slane %v1750, 1
    %v1757 = vperm.slane %v1750, 2
    %v1758 = vperm.slane %v1750, 3
    %v1759 = vperm.slane %v1750, 4
    %v1760 = vperm.slane %v1750, 5
    %v1761 = vperm.slane %v1750, 6
    %v1762 = vperm.slane %v1750, 7
    %v1771 = vsub.f32 %v1698, %v1755
    %v1772 = vsub.f32 %v1700, %v1756
    %v1773 = vsub.f32 %v1702, %v1757
    %v1774 = vsub.f32 %v1704, %v1758
    %v1775 = vsub.f32 %v1706, %v1759
    %v1776 = vsub.f32 %v1708, %v1760
    %v1777 = vsub.f32 %v1710, %v1761
    %v1778 = vsub.f32 %v1712, %v1762
    %v1779 = vmul.f32 %v1771, 1.442695
    %v1780 = vpow.pop %v1779
    %v1781 = vmul.f32 %v1772, 1.442695
    %v1782 = vpow.pop %v1781
    %v1783 = vmul.f32 %v1773, 1.442695
    %v1784 = vpow.pop %v1783
    %v1785 = vmul.f32 %v1774, 1.442695
    %v1786 = vpow.pop %v1785
    %v1787 = vmul.f32 %v1775, 1.442695
    %v1788 = vpow.pop %v1787
    %v1789 = vmul.f32 %v1776, 1.442695
    %v1790 = vpow.pop %v1789
    %v1791 = vmul.f32 %v1777, 1.442695
    %v1792 = vpow.pop %v1791
    %v1793 = vmul.f32 %v1778, 1.442695
    %v1794 = vpow.pop %v1793
    %1803 = vset.pattern.permute.xlu0 0
    %1804 = vperm.xlu0 %1803, %v1780
    %v1805 = vpop.permute.xlu0 %1804
    %1806 = vset.pattern.permute.xlu0 0
    %1807 = vperm.xlu0 %1806, %v1782
    %v1808 = vpop.permute.xlu0 %1807
    %1809 = vset.pattern.permute.xlu0 0
    %1810 = vperm.xlu0 %1809, %v1784
    %v1811 = vpop.permute.xlu0 %1810
    %1812 = vset.pattern.permute.xlu0 0
    %1813 = vperm.xlu0 %1812, %v1786
    %v1814 = vpop.permute.xlu0 %1813
    %1815 = vset.pattern.permute.xlu0 0
    %1816 = vperm.xlu0 %1815, %v1788
    %v1817 = vpop.permute.xlu0 %1816
    %1818 = vset.pattern.permute.xlu0 0
    %1819 = vperm.xlu0 %1818, %v1790
    %v1820 = vpop.permute.xlu0 %1819
    %1821 = vset.pattern.permute.xlu0 0
    %1822 = vperm.xlu0 %1821, %v1792
    %v1823 = vpop.permute.xlu0 %1822
    %1824 = vset.pattern.permute.xlu0 0
    %1825 = vperm.xlu0 %1824, %v1794
    %v1826 = vpop.permute.xlu0 %1825
    %v1827 = vperm.slane %v1805, %v1722
    %v1828 = vperm.slane %v1808, %v1722
    %v1829 = vperm.slane %v1811, %v1722
    %v1830 = vperm.slane %v1814, %v1722
    %v1831 = vperm.slane %v1817, %v1722
    %v1832 = vperm.slane %v1820, %v1722
    %v1833 = vperm.slane %v1823, %v1722
    %v1834 = vperm.slane %v1826, %v1722
    %v1835 = vsel %vm1731, %v1828, %v1827
    %v1836 = vsel %vm1733, %v1829, %v1835
    %v1837 = vsel %vm1735, %v1830, %v1836
    %v1838 = vsel %vm1737, %v1831, %v1837
    %v1839 = vsel %vm1739, %v1832, %v1838
    %v1840 = vsel %vm1741, %v1833, %v1839
    %v1841 = vsel %vm1743, %v1834, %v1840
    %v1843 = vsel %vm1746, %v1841, 0.0
    %1844 = vadd.xlane.f32.xlu0 %v1843
    %v1845 = vpop.xlane.xlu0 %1844
    %v1846 = vadd.f32 %v1753, %v1845
    %v1847 = vrcp.pop %v1846
    %v1848 = vmul.f32 %v1753, %v1847
    %v1850 = vperm.slane %v1847, 0
    %v1851 = vperm.slane %v1847, 1
    %v1852 = vperm.slane %v1847, 2
    %v1853 = vperm.slane %v1847, 3
    %v1854 = vperm.slane %v1847, 4
    %v1855 = vperm.slane %v1847, 5
    %v1856 = vperm.slane %v1847, 6
    %v1857 = vperm.slane %v1847, 7
    %v1866 = vmul.f32 %v1780, %v1850
    %v1867 = vmul.f32 %v1782, %v1851
    %v1868 = vmul.f32 %v1784, %v1852
    %v1869 = vmul.f32 %v1786, %v1853
    %v1870 = vmul.f32 %v1788, %v1854
    %v1871 = vmul.f32 %v1790, %v1855
    %v1872 = vmul.f32 %v1792, %v1856
    %v1873 = vmul.f32 %v1794, %v1857
    %v1874 = vld [vmem:[#allocation10] sm:$0xf]
    %v1875 = vld [vmem:[#allocation10 + $0x4] sm:$0xf]
    %v1876 = vld [vmem:[#allocation10 + $0x8] sm:$0xf]
    %v1877 = vld [vmem:[#allocation10 + $0xc] sm:$0xf]
    %v1878 = vld [vmem:[#allocation10 + $0x10] sm:$0xf]
    %v1879 = vld [vmem:[#allocation10 + $0x14] sm:$0xf]
    %v1880 = vld [vmem:[#allocation10 + $0x18] sm:$0xf]
    %v1881 = vld [vmem:[#allocation10 + $0x1c] sm:$0xf]
    %v1882 = vunpack.c.l.bf16 %v1874
    %v1883 = vunpack.c.l.bf16 %v1875
    %v1884 = vunpack.c.l.bf16 %v1876
    %v1885 = vunpack.c.l.bf16 %v1877
    %v1886 = vunpack.c.l.bf16 %v1878
    %v1887 = vunpack.c.l.bf16 %v1879
    %v1888 = vunpack.c.l.bf16 %v1880
    %v1889 = vunpack.c.l.bf16 %v1881
    %v1890 = vmul.f32 %v1848, %v1378
    %1892 = vset.pattern.permute.xlu0 0
    %1893 = vperm.xlu0 %1892, %v1866
    %v1894 = vpop.permute.xlu0 %1893
    %1897 = vset.pattern.permute.xlu0 0
    %1898 = vperm.xlu0 %1897, %v1867
    %v1899 = vpop.permute.xlu0 %1898
    %1902 = vset.pattern.permute.xlu0 0
    %1903 = vperm.xlu0 %1902, %v1868
    %v1904 = vpop.permute.xlu0 %1903
    %1907 = vset.pattern.permute.xlu0 0
    %1908 = vperm.xlu0 %1907, %v1869
    %v1909 = vpop.permute.xlu0 %1908
    %1912 = vset.pattern.permute.xlu0 0
    %1913 = vperm.xlu0 %1912, %v1870
    %v1914 = vpop.permute.xlu0 %1913
    %1917 = vset.pattern.permute.xlu0 0
    %1918 = vperm.xlu0 %1917, %v1871
    %v1919 = vpop.permute.xlu0 %1918
    %1922 = vset.pattern.permute.xlu0 0
    %1923 = vperm.xlu0 %1922, %v1872
    %v1924 = vpop.permute.xlu0 %1923
    %1927 = vset.pattern.permute.xlu0 0
    %1928 = vperm.xlu0 %1927, %v1873
    %v1929 = vpop.permute.xlu0 %1928
    %v1931 = vmul.f32 %v1894, %v1882
    %v1932 = vmul.f32 %v1899, %v1883
    %v1933 = vmul.f32 %v1904, %v1884
    %v1934 = vmul.f32 %v1909, %v1885
    %v1935 = vmul.f32 %v1914, %v1886
    %v1936 = vmul.f32 %v1919, %v1887
    %v1937 = vmul.f32 %v1924, %v1888
    %v1938 = vmul.f32 %v1929, %v1889
    %v1939 = vrot.slane %v1931, 4
    %v1940 = vadd.f32 %v1931, %v1939
    %v1941 = vrot.slane %v1940, 2
    %v1942 = vadd.f32 %v1940, %v1941
    %v1943 = vrot.slane %v1942, 1
    %v1944 = vadd.f32 %v1942, %v1943
    %v1945 = vrot.slane %v1932, 4
    %v1946 = vadd.f32 %v1932, %v1945
    %v1947 = vrot.slane %v1946, 2
    %v1948 = vadd.f32 %v1946, %v1947
    %v1949 = vrot.slane %v1948, 1
    %v1950 = vadd.f32 %v1948, %v1949
    %v1951 = vrot.slane %v1933, 4
    %v1952 = vadd.f32 %v1933, %v1951
    %v1953 = vrot.slane %v1952, 2
    %v1954 = vadd.f32 %v1952, %v1953
    %v1955 = vrot.slane %v1954, 1
    %v1956 = vadd.f32 %v1954, %v1955
    %v1957 = vrot.slane %v1934, 4
    %v1958 = vadd.f32 %v1934, %v1957
    %v1959 = vrot.slane %v1958, 2
    %v1960 = vadd.f32 %v1958, %v1959
    %v1961 = vrot.slane %v1960, 1
    %v1962 = vadd.f32 %v1960, %v1961
    %v1963 = vrot.slane %v1935, 4
    %v1964 = vadd.f32 %v1935, %v1963
    %v1965 = vrot.slane %v1964, 2
    %v1966 = vadd.f32 %v1964, %v1965
    %v1967 = vrot.slane %v1966, 1
    %v1968 = vadd.f32 %v1966, %v1967
    %v1969 = vrot.slane %v1936, 4
    %v1970 = vadd.f32 %v1936, %v1969
    %v1971 = vrot.slane %v1970, 2
    %v1972 = vadd.f32 %v1970, %v1971
    %v1973 = vrot.slane %v1972, 1
    %v1974 = vadd.f32 %v1972, %v1973
    %v1975 = vrot.slane %v1937, 4
    %v1976 = vadd.f32 %v1937, %v1975
    %v1977 = vrot.slane %v1976, 2
    %v1978 = vadd.f32 %v1976, %v1977
    %v1979 = vrot.slane %v1978, 1
    %v1980 = vadd.f32 %v1978, %v1979
    %v1981 = vrot.slane %v1938, 4
    %v1982 = vadd.f32 %v1938, %v1981
    %v1983 = vrot.slane %v1982, 2
    %v1984 = vadd.f32 %v1982, %v1983
    %v1985 = vrot.slane %v1984, 1
    %v1986 = vadd.f32 %v1984, %v1985
    %v1995 = vsel %vm1731, %v1950, %v1944
    %v1996 = vsel %vm1733, %v1956, %v1995
    %v1997 = vsel %vm1735, %v1962, %v1996
    %v1998 = vsel %vm1737, %v1968, %v1997
    %v1999 = vsel %vm1739, %v1974, %v1998
    %v2000 = vsel %vm1741, %v1980, %v1999
    %v2001 = vsel %vm1743, %v1986, %v2000
    %v2003 = vadd.f32 %v1890, %v2001
    %v2004 = vadd.f32 %v2003, %v1461
    %v2005 = vld [vmem:[#allocation17] sm:$0xf]
    %v2006 = vld [vmem:[#allocation17 + $0x4] sm:$0xf]
    %v2007 = vld [vmem:[#allocation17 + $0x8] sm:$0xf]
    %v2008 = vld [vmem:[#allocation17 + $0xc] sm:$0xf]
    %v2009 = vld [vmem:[#allocation17 + $0x10] sm:$0xf]
    %v2010 = vld [vmem:[#allocation17 + $0x14] sm:$0xf]
    %v2011 = vld [vmem:[#allocation17 + $0x18] sm:$0xf]
    %v2012 = vld [vmem:[#allocation17 + $0x1c] sm:$0xf]
    %v2013 = vld [vmem:[#allocation17 + $0x20] sm:$0xf]
    %v2014 = vld [vmem:[#allocation17 + $0x24] sm:$0xf]
    %v2015 = vld [vmem:[#allocation17 + $0x28] sm:$0xf]
    %v2016 = vld [vmem:[#allocation17 + $0x2c] sm:$0xf]
    %v2017 = vld [vmem:[#allocation17 + $0x30] sm:$0xf]
    %v2018 = vld [vmem:[#allocation17 + $0x34] sm:$0xf]
    %v2019 = vld [vmem:[#allocation17 + $0x38] sm:$0xf]
    %v2020 = vld [vmem:[#allocation17 + $0x3c] sm:$0xf]
    %v2021 = vpack.c.bf16 %v2004, %v2004
    %v2023 = vperm.slane %v222, 0
    %v2041 = vunpack.c.l.b16 %v2005
    %v2042 = vunpack.c.l.b16 %v2006
    %v2043 = vunpack.c.l.b16 %v2007
    %v2044 = vunpack.c.l.b16 %v2008
    %v2045 = vunpack.c.l.b16 %v2009
    %v2046 = vunpack.c.l.b16 %v2010
    %v2047 = vunpack.c.l.b16 %v2011
    %v2048 = vunpack.c.l.b16 %v2012
    %v2049 = vunpack.c.l.b16 %v2013
    %v2050 = vunpack.c.l.b16 %v2014
    %v2051 = vunpack.c.l.b16 %v2015
    %v2052 = vunpack.c.l.b16 %v2016
    %v2053 = vunpack.c.l.b16 %v2017
    %v2054 = vunpack.c.l.b16 %v2018
    %v2055 = vunpack.c.l.b16 %v2019
    %v2056 = vunpack.c.l.b16 %v2020
    %v2057 = vpack.c.b16 %v2042, %v2041
    %v2058 = vpack.c.b16 %v2044, %v2043
    %v2059 = vpack.c.b16 %v2046, %v2045
    %v2060 = vpack.c.b16 %v2048, %v2047
    %v2061 = vpack.c.b16 %v2050, %v2049
    %v2062 = vpack.c.b16 %v2052, %v2051
    %v2063 = vpack.c.b16 %v2054, %v2053
    %v2064 = vpack.c.b16 %v2056, %v2055
    %2073 = vmatpush.bf16.msra.mxu0 %v2064
    %2074 = vmatpush.bf16.msra.mxu0 %v2063
    %2075 = vmatpush.bf16.msra.mxu0 %v2062
    %2076 = vmatpush.bf16.msra.mxu0 %v2061
    %2077 = vmatpush.bf16.msra.mxu0 %v2060
    %2078 = vmatpush.bf16.msra.mxu0 %v2059
    %2079 = vmatpush.bf16.msra.mxu0 %v2058
    %2080 = vmatpush.bf16.msra.mxu0 %v2057
    %2081 = vmatmul.bf16.gmra.mxu0 %v2021
    %v2082 = vpop.f32.mrf.mxu0
    %v2083 = vadd.f32 %v2023, %v2082
    %v2084 = vpop.f32.mrf.mxu0
    %2085 = vdwg.mxu0
    %v2086 = vtanh.pop %v2083
    %2087 = vst [vmem:[#allocation20] sm:$0xff] %v2086
    // Predicated region
    $region94: #{tpu_custom_call.1} parent=1 // pred_check
      _
    $region95: #{tpu_custom_call.1} parent=1 // pred_check_branch
      %2089 = sbr.rel (0) target = $region97
    $region96: #{tpu_custom_call.1} parent=1 // pred_region
      %2091 = vsyncadd [#allocation4], 0
      %s2093 = sshll.u32 [#allocation20], 4
      %s2094 = int_to_ptr.vmem [resolvable:$true] %s2093
      %s2095 = sshll.u32 %s11, 4
      %s2096 = int_to_ptr.hbm [resolvable:$true] %s2095
      %2098 = dma.vmem_to_hbm [thread:$0]  %s2094, 128, %s2096, [#allocation4]
    $region97: #{tpu_custom_call.1} parent=1 // pred_fallthru
      _
    // Predicated region
    $region98: #{tpu_custom_call.1} parent=1 // pred_check
      _
    $region99: #{tpu_custom_call.1} parent=1 // pred_check_branch
      %2100 = sbr.rel (0) target = $region101
    $region100: #{tpu_custom_call.1} parent=1 // pred_region
      %2102 = vsyncadd [#allocation22], 0
      %s2104 = sshll.u32 [#allocation21], 4
      %s2105 = int_to_ptr.vmem [resolvable:$true] %s2104
      %s2106 = sshll.u32 %s12, 4
      %s2107 = int_to_ptr.hbm [resolvable:$true] %s2106
      %2109 = dma.vmem_to_hbm [thread:$0]  %s2105, 128, %s2107, [#allocation22]
    $region101: #{tpu_custom_call.1} parent=1 // pred_fallthru
      _
    // Predicated region
    $region102: #{tpu_custom_call.1} parent=1 // pred_check
      _
    $region103: #{tpu_custom_call.1} parent=1 // pred_check_branch
      %2111 = sbr.rel (0) target = $region105
    $region104: #{tpu_custom_call.1} parent=1 // pred_region
      %2113 = vsyncadd [#allocation22], 0
      %s2115 = sshll.u32 [#allocation23], 4
      %s2116 = int_to_ptr.vmem [resolvable:$true] %s2115
      %s2117 = sshll.u32 %s13, 4
      %s2118 = int_to_ptr.hbm [resolvable:$true] %s2117
      %2120 = dma.vmem_to_hbm [thread:$0]  %s2116, 128, %s2118, [#allocation22]
    $region105: #{tpu_custom_call.1} parent=1 // pred_fallthru
      _
    // Predicated region
    $region106: #{tpu_custom_call.1} parent=1 // pred_check
      _
    $region107: #{tpu_custom_call.1} parent=1 // pred_check_branch
      %2122 = sbr.rel (0) target = $region109
    $region108: #{tpu_custom_call.1} parent=1 // pred_region
      %2124 = dma.done [#allocation4], 128
    $region109: #{tpu_custom_call.1} parent=1 // pred_fallthru
      _
    // Predicated region
    $region110: #{tpu_custom_call.1} parent=1 // pred_check
      _
    $region111: #{tpu_custom_call.1} parent=1 // pred_check_branch
      %2126 = sbr.rel (0) target = $region113
    $region112: #{tpu_custom_call.1} parent=1 // pred_region
      %2128 = dma.done [#allocation22], 128
    $region113: #{tpu_custom_call.1} parent=1 // pred_fallthru
      _
    // Predicated region
    $region114: #{tpu_custom_call.1} parent=1 // pred_check
      _
    $region115: #{tpu_custom_call.1} parent=1 // pred_check_branch
      %2130 = sbr.rel (0) target = $region117
    $region116: #{tpu_custom_call.1} parent=1 // pred_region
      %2132 = dma.done [#allocation22], 128
    $region117: #{tpu_custom_call.1} parent=1 // pred_fallthru
      _
    %2133 = vsyncpa [#allocation3], 1
    %2134 = vsyncpa [#allocation6], 1
    %2135 = vsyncpa [#allocation9], 1
    %2136 = vsyncpa [#allocation12], 1
    %2137 = vsyncpa [#allocation15], 1
    %2138 = vsyncpa [#allocation18], 1
    %2139 = vsyncpa [#allocation4], 1
    %2140 = vsyncpa [#allocation22], 1

</llo_original>
